<compile_context>
chip_gen: v5e
topology: v5e:2x2
jax: 0.10.0
libtpu: 0.0.40
codegen_flags: <defaults>
</compile_context>

<pallas_src>
import functools

import jax
import jax.numpy as jnp
from jax.experimental import pallas as pl
from jax.experimental.pallas import tpu as pltpu


# ----------------------------------------------------------------------------
# Fused kernel: [banded conv3x3 + bias + ReLU] x 2  +  2x2 max-pool.
# One block of `bblk` batch images per grid step; all intermediates in VMEM.
# ----------------------------------------------------------------------------
def _enc_block_kernel(x_ref, w1_ref, b1_ref, w2_ref, b2_ref,
                      y_ref, r_ref, xr_ref, hr_ref, *, cout):
    # x_ref : (bblk, H, W*Cin)          row-flattened input block (f32)
    # w1_ref: (3, W*Cin, W*Cmid)        banded conv1 weights (bf16), one per ky
    # b1_ref: (1, W*Cmid)               conv1 bias tiled across W (f32)
    # w2_ref: (3, W*Cmid, W*Cout)       banded conv2 weights (bf16)
    # b2_ref: (1, W*Cout)
    # y_ref : (bblk, H/2, (W/2)*Cout)   pooled output (lane-dense)
    # r_ref : (bblk, H,   W*Cout)       pre-pool output / skip (lane-dense)
    # xr_ref: (bblk, H+2, W*Cin)        VMEM scratch: x rows + 2-row H halo (bf16)
    # hr_ref: (bblk, H+2, W*Cmid)       VMEM scratch: h rows + 2-row H halo (bf16)
    bblk, hdim, wcin = x_ref.shape
    wcmid = b1_ref.shape[-1]
    wcout = r_ref.shape[-1]
    hh = y_ref.shape[1]
    wh = y_ref.shape[2] // cout
    cdt = xr_ref.dtype

    # ---- stage input rows; only the 1-row top/bottom halo needs zeroing
    #      (the W-direction zero padding is folded into the band weights).
    #      Halo rows are tiny, so zero them every step -> correct even when the
    #      batch axis is sharded across TensorCores. ----
    xr_ref[:, 0, :] = jnp.zeros((bblk, wcin), cdt)
    xr_ref[:, hdim + 1, :] = jnp.zeros((bblk, wcin), cdt)
    xr_ref[:, 1:hdim + 1, :] = x_ref[...].astype(cdt)

    # ---- conv1: three banded MXU matmuls (one per kernel row), f32 accumulate ----
    acc1 = jnp.zeros((bblk * hdim, wcmid), jnp.float32)
    for ky in range(3):
        lhs = xr_ref[:, ky:ky + hdim, :].reshape(bblk * hdim, wcin)
        acc1 = acc1 + jnp.dot(lhs, w1_ref[ky], preferred_element_type=jnp.float32)
    h = jnp.maximum(acc1 + b1_ref[...], 0.0)            # bias + ReLU, lane-dense

    # ---- conv1 output stays in VMEM (no HBM round trip between the convs) ----
    hr_ref[:, 0, :] = jnp.zeros((bblk, wcmid), cdt)
    hr_ref[:, hdim + 1, :] = jnp.zeros((bblk, wcmid), cdt)
    hr_ref[:, 1:hdim + 1, :] = h.reshape(bblk, hdim, wcmid).astype(cdt)

    # ---- conv2: same banded scheme ----
    acc2 = jnp.zeros((bblk * hdim, wcout), jnp.float32)
    for ky in range(3):
        lhs = hr_ref[:, ky:ky + hdim, :].reshape(bblk * hdim, wcmid)
        acc2 = acc2 + jnp.dot(lhs, w2_ref[ky], preferred_element_type=jnp.float32)
    r = jnp.maximum(acc2 + b2_ref[...], 0.0)            # (bblk*H, W*Cout)

    # ---- lane-dense store of the skip connection ----
    r_ref[...] = r.reshape(bblk, hdim, wcout).astype(r_ref.dtype)

    # ---- fused 2x2 max-pool, stride 2 (no extra HBM pass over r) ----
    rh = jnp.max(r.reshape(bblk, hh, 2, wcout), axis=2)      # pool H row pairs
    rw = rh.reshape(bblk * hh, wh, 2 * cout)                 # adjacent W pairs on lanes
    yv = jnp.maximum(rw[:, :, :cout], rw[:, :, cout:])       # pool W pairs
    y_ref[...] = yv.reshape(bblk, hh, wh * cout).astype(y_ref.dtype)


# ----------------------------------------------------------------------------
# Banded weight construction: fold kx taps + W zero-padding into a matmul.
# band[ky][wi*Cin + ci, wo*Cout + co] = w_hwio[ky, wi-wo+1, ci, co] if |wi-wo|<=1
# ----------------------------------------------------------------------------
def _banded_conv_weights(w_hwio, width):
    kh, kw, cin, cout_ = w_hwio.shape
    wi = jnp.arange(width)[:, None]
    wo = jnp.arange(width)[None, :]
    kx = wi - wo + 1                                            # (W, W)
    valid = (kx >= 0) & (kx <= kw - 1)
    kx_c = jnp.clip(kx, 0, kw - 1)
    taps = w_hwio[:, kx_c]                                      # (3, W, W, Cin, Cout)
    taps = jnp.where(valid[None, :, :, None, None], taps, 0.0)
    band = jnp.transpose(taps, (0, 1, 3, 2, 4))                 # (3, Wi, Cin, Wo, Cout)
    return band.reshape(kh, width * cin, width * cout_)


def _pick_batch_block(n, per_image_bytes, budget_bytes=8 << 20):
    """Largest divisor of n that fits the VMEM budget, preferring >=2 grid steps
    (so v7x's two TensorCores both get work via the 'parallel' batch axis)."""
    cap = max(1, budget_bytes // max(per_image_bytes, 1))
    divisors = [d for d in range(1, n + 1) if n % d == 0 and d <= cap]
    if not divisors:
        divisors = [1]
    pref = [d for d in divisors if n // d >= 2]
    return max(pref) if pref else max(divisors)


# ----------------------------------------------------------------------------
# UNetEncBlock.forward
# ----------------------------------------------------------------------------
def unet_enc_block_forward(x, params, *, compute_dtype=jnp.bfloat16,
                           out_dtype=jnp.float32, nchw_io=True, block_batch=None):
    """Returns (y, r) exactly like UNetEncBlock.forward.

    params use PyTorch Conv2d layout: w (Cout, Cin, 3, 3), b (Cout,).
    nchw_io=False accepts/returns NHWC and skips the boundary transposes
    (recommended for callers that can consume channels-last skips directly).
    """
    x_nhwc = jnp.transpose(x, (0, 2, 3, 1)) if nchw_io else x
    N, H, W, Cin = x_nhwc.shape
    assert H % 2 == 0 and W % 2 == 0, "MaxPool2d(2) requires even H and W"

    # PyTorch OIHW -> HWIO, then fold kx taps + W padding into banded matrices.
    w1_hwio = jnp.transpose(params["w1"], (2, 3, 1, 0))
    w2_hwio = jnp.transpose(params["w2"], (2, 3, 1, 0))
    Cmid, Cout = w1_hwio.shape[-1], w2_hwio.shape[-1]
    band1 = _banded_conv_weights(w1_hwio.astype(jnp.float32), W).astype(compute_dtype)
    band2 = _banded_conv_weights(w2_hwio.astype(jnp.float32), W).astype(compute_dtype)
    b1t = jnp.tile(params["b1"].astype(jnp.float32), W).reshape(1, W * Cmid)
    b2t = jnp.tile(params["b2"].astype(jnp.float32), W).reshape(1, W * Cout)
    Hh, Wh = H // 2, W // 2

    x_rows = x_nhwc.reshape(N, H, W * Cin)          # free reshape: rows on lanes

    # Rough per-image VMEM footprint (double-buffered IO blocks + scratch + live f32).
    csize = jnp.finfo(compute_dtype).bits // 8
    per_img = ((2 * H * W * Cin + 2 * H * W * Cout + 2 * Hh * Wh * Cout) * 4
               + (H + 2) * W * (Cin + Cmid) * csize
               + 2 * H * W * (Cmid + Cout) * 4)
    bblk = block_batch if block_batch is not None else _pick_batch_block(N, per_img)
    assert N % bblk == 0, (N, bblk)

    kernel = functools.partial(_enc_block_kernel, cout=Cout)

    y_rows, r_rows = pl.pallas_call(
        kernel,
        out_shape=(
            jax.ShapeDtypeStruct((N, Hh, Wh * Cout), out_dtype),   # y (pooled)
            jax.ShapeDtypeStruct((N, H, W * Cout), out_dtype),     # r (skip)
        ),
        grid=(N // bblk,),
        in_specs=[
            pl.BlockSpec((bblk, H, W * Cin), lambda n: (n, 0, 0)),
            pl.BlockSpec((3, W * Cin, W * Cmid), lambda n: (0, 0, 0)),
            pl.BlockSpec((1, W * Cmid), lambda n: (0, 0)),
            pl.BlockSpec((3, W * Cmid, W * Cout), lambda n: (0, 0, 0)),
            pl.BlockSpec((1, W * Cout), lambda n: (0, 0)),
        ],
        out_specs=(
            pl.BlockSpec((bblk, Hh, Wh * Cout), lambda n: (n, 0, 0)),
            pl.BlockSpec((bblk, H, W * Cout), lambda n: (n, 0, 0)),
        ),
        scratch_shapes=[
            pltpu.VMEM((bblk, H + 2, W * Cin), compute_dtype),    # x rows + H halo
            pltpu.VMEM((bblk, H + 2, W * Cmid), compute_dtype),   # h rows + H halo
        ],
        compiler_params=pltpu.CompilerParams(
            dimension_semantics=("parallel",),      # shard batch blocks over TCs (v7x)
            vmem_limit_bytes=48 * 1024 * 1024,      # headroom on v7x's 64 MiB VMEM
        ),
    )(x_rows, band1, b1t, band2, b2t)

    r = r_rows.reshape(N, H, W, Cout)
    y = y_rows.reshape(N, Hh, Wh, Cout)
    if nchw_io:
        r = jnp.transpose(r, (0, 3, 1, 2))
        y = jnp.transpose(y, (0, 3, 1, 2))
    return y, r


# ----------------------------------------------------------------------------
# Pure-JAX reference (mirrors the kernel's bf16-operand / f32-accum precision)
# ----------------------------------------------------------------------------
def _ref_forward(x_nchw, params, compute_dtype=jnp.bfloat16):
    x = jnp.transpose(x_nchw, (0, 2, 3, 1))
    w1 = jnp.transpose(params["w1"], (2, 3, 1, 0)).astype(compute_dtype)
    w2 = jnp.transpose(params["w2"], (2, 3, 1, 0)).astype(compute_dtype)

    def conv(a, w, b):
        out = jax.lax.conv_general_dilated(
            a.astype(compute_dtype), w, window_strides=(1, 1), padding="SAME",
            dimension_numbers=("NHWC", "HWIO", "NHWC"),
            preferred_element_type=jnp.float32)
        return jnp.maximum(out + b.reshape(1, 1, 1, -1).astype(jnp.float32), 0.0)

    h = conv(x, w1, params["b1"])
    r = conv(h, w2, params["b2"])
    N, H, W, C = r.shape
    y = jnp.max(r.reshape(N, H // 2, 2, W // 2, 2, C), axis=(2, 4))
    return jnp.transpose(y, (0, 3, 1, 2)), jnp.transpose(r, (0, 3, 1, 2))


if __name__ == "__main__":
    key = jax.random.PRNGKey(0)
    k_x, k_w1, k_b1, k_w2, k_b2 = jax.random.split(key, 5)

    # UNetEncBlock(features=8, ..., input_shape=(4, 16, 16)), batch = 2
    N, C, H, W = 2, 4, 16, 16
    features = 8

    x = jax.random.normal(k_x, (N, C, H, W), jnp.float32)
    # PyTorch Conv2d parameter layout: weight (Cout, Cin, 3, 3), bias (Cout,)
    params = {
        "w1": jax.random.normal(k_w1, (features, C, 3, 3), jnp.float32) * 0.2,
        "b1": jax.random.normal(k_b1, (features,), jnp.float32) * 0.1,
        "w2": jax.random.normal(k_w2, (features, features, 3, 3), jnp.float32) * 0.2,
        "b2": jax.random.normal(k_b2, (features,), jnp.float32) * 0.1,
    }

    y, r = jax.jit(unet_enc_block_forward)(x, params)
    jax.block_until_ready((y, r))

    # shape checks: output_shape == (features, H//2, W//2); r is pre-downsample
    assert y.shape == (N, features, H // 2, W // 2), y.shape
    assert r.shape == (N, features, H, W), r.shape

    y_ref, r_ref = _ref_forward(x, params)
    assert jnp.allclose(r, r_ref, atol=5e-3, rtol=5e-3), \
        float(jnp.max(jnp.abs(r - r_ref)))
    assert jnp.allclose(y, y_ref, atol=5e-3, rtol=5e-3), \
        float(jnp.max(jnp.abs(y - y_ref)))

    print("KERNEL_OK")
</pallas_src>

<mosaic_0001>
module attributes {stable_mosaic.version = 11 : i64} {
  func.func @_enc_block_kernel(%arg0: i32, %arg1: memref<1x16x64xf32, #tpu.memory_space<vmem>>, %arg2: memref<3x64x128xbf16, #tpu.memory_space<vmem>>, %arg3: memref<1x128xf32, #tpu.memory_space<vmem>>, %arg4: memref<3x128x128xbf16, #tpu.memory_space<vmem>>, %arg5: memref<1x128xf32, #tpu.memory_space<vmem>>, %arg6: memref<1x8x64xf32, #tpu.memory_space<vmem>>, %arg7: memref<1x16x128xf32, #tpu.memory_space<vmem>>, %arg8: memref<1x18x64xbf16, #tpu.memory_space<vmem>>, %arg9: memref<1x18x128xbf16, #tpu.memory_space<vmem>>) attributes {dimension_semantics = [#tpu.dimension_semantics<parallel>], iteration_bounds = array<i64: 2>, scalar_prefetch = 0 : i64, scratch_operands = 2 : i64, tpu.core_type = #tpu.core_type<tc>, window_params = [{transform_indices = @transform_0, window_bounds = array<i64: 1, 16, 64>}, {pipeline_mode = #tpu.pipeline_mode<synchronous>, transform_indices = @transform_1, window_bounds = array<i64: 3, 64, 128>}, {pipeline_mode = #tpu.pipeline_mode<synchronous>, transform_indices = @transform_2, window_bounds = array<i64: 1, 128>}, {pipeline_mode = #tpu.pipeline_mode<synchronous>, transform_indices = @transform_3, window_bounds = array<i64: 3, 128, 128>}, {pipeline_mode = #tpu.pipeline_mode<synchronous>, transform_indices = @transform_4, window_bounds = array<i64: 1, 128>}, {transform_indices = @transform_5, window_bounds = array<i64: 1, 8, 64>}, {transform_indices = @transform_6, window_bounds = array<i64: 1, 16, 128>}]} {
    %cst = arith.constant 0.000000e+00 : bf16
    %0 = vector.broadcast %cst : bf16 to vector<1x64xbf16>
    %c0 = arith.constant 0 : index
    %c0_0 = arith.constant 0 : index
    %c0_1 = arith.constant 0 : index
    %1 = vector.load %arg8[%c0, %c0_0, %c0_1] : memref<1x18x64xbf16, #tpu.memory_space<vmem>>, vector<1x1x64xbf16>
    %2 = vector.shape_cast %1 : vector<1x1x64xbf16> to vector<1x64xbf16>
    %3 = vector.shape_cast %0 : vector<1x64xbf16> to vector<1x1x64xbf16>
    tpu.vector_store %arg8[%c0, %c0_0, %c0_1], %3 {strides = array<i32>} : memref<1x18x64xbf16, #tpu.memory_space<vmem>>, vector<1x1x64xbf16>,
    %cst_2 = arith.constant 0.000000e+00 : bf16
    %4 = vector.broadcast %cst_2 : bf16 to vector<1x64xbf16>
    %c0_3 = arith.constant 0 : index
    %c17 = arith.constant 17 : index
    %c0_4 = arith.constant 0 : index
    %5 = vector.load %arg8[%c0_3, %c17, %c0_4] : memref<1x18x64xbf16, #tpu.memory_space<vmem>>, vector<1x1x64xbf16>
    %6 = vector.shape_cast %5 : vector<1x1x64xbf16> to vector<1x64xbf16>
    %7 = vector.shape_cast %4 : vector<1x64xbf16> to vector<1x1x64xbf16>
    tpu.vector_store %arg8[%c0_3, %c17, %c0_4], %7 {strides = array<i32>} : memref<1x18x64xbf16, #tpu.memory_space<vmem>>, vector<1x1x64xbf16>,
    %c0_5 = arith.constant 0 : index
    %c0_6 = arith.constant 0 : index
    %c0_7 = arith.constant 0 : index
    %8 = vector.load %arg1[%c0_5, %c0_6, %c0_7] : memref<1x16x64xf32, #tpu.memory_space<vmem>>, vector<1x16x64xf32>
    %9 = arith.truncf %8 : vector<1x16x64xf32> to vector<1x16x64xbf16>
    %c0_8 = arith.constant 0 : index
    %c1 = arith.constant 1 : index
    %c0_9 = arith.constant 0 : index
    %10 = vector.load %arg8[%c0_8, %c1, %c0_9] : memref<1x18x64xbf16, #tpu.memory_space<vmem>>, vector<1x16x64xbf16>
    tpu.vector_store %arg8[%c0_8, %c1, %c0_9], %9 {strides = array<i32>} : memref<1x18x64xbf16, #tpu.memory_space<vmem>>, vector<1x16x64xbf16>,
    %cst_10 = arith.constant 0.000000e+00 : f32
    %11 = vector.broadcast %cst_10 : f32 to vector<16x128xf32>
    %c0_11 = arith.constant 0 : index
    %c0_12 = arith.constant 0 : index
    %c0_13 = arith.constant 0 : index
    %12 = vector.load %arg8[%c0_11, %c0_12, %c0_13] : memref<1x18x64xbf16, #tpu.memory_space<vmem>>, vector<1x16x64xbf16>
    %13 = vector.shape_cast %12 : vector<1x16x64xbf16> to vector<16x64xbf16>
    %c0_14 = arith.constant 0 : index
    %c0_15 = arith.constant 0 : index
    %c0_16 = arith.constant 0 : index
    %14 = vector.load %arg2[%c0_14, %c0_15, %c0_16] : memref<3x64x128xbf16, #tpu.memory_space<vmem>>, vector<1x64x128xbf16>
    %15 = vector.shape_cast %14 : vector<1x64x128xbf16> to vector<64x128xbf16>
    %cst_17 = arith.constant dense<0.000000e+00> : vector<16x128xf32>
    %16 = tpu.matmul %13, %15, %cst_17 {dimension_numbers = #tpu.dot_dimension_numbers<[1], [0], [0], [1], [0, 0, 1, 1], [], []>} : vector<16x64xbf16>, vector<64x128xbf16>, vector<16x128xf32> -> vector<16x128xf32>
    %17 = arith.addf %11, %16 : vector<16x128xf32>
    %c0_18 = arith.constant 0 : index
    %c1_19 = arith.constant 1 : index
    %c0_20 = arith.constant 0 : index
    %18 = vector.load %arg8[%c0_18, %c1_19, %c0_20] : memref<1x18x64xbf16, #tpu.memory_space<vmem>>, vector<1x16x64xbf16>
    %19 = vector.shape_cast %18 : vector<1x16x64xbf16> to vector<16x64xbf16>
    %c1_21 = arith.constant 1 : index
    %c0_22 = arith.constant 0 : index
    %c0_23 = arith.constant 0 : index
    %20 = vector.load %arg2[%c1_21, %c0_22, %c0_23] : memref<3x64x128xbf16, #tpu.memory_space<vmem>>, vector<1x64x128xbf16>
    %21 = vector.shape_cast %20 : vector<1x64x128xbf16> to vector<64x128xbf16>
    %cst_24 = arith.constant dense<0.000000e+00> : vector<16x128xf32>
    %22 = tpu.matmul %19, %21, %cst_24 {dimension_numbers = #tpu.dot_dimension_numbers<[1], [0], [0], [1], [0, 0, 1, 1], [], []>} : vector<16x64xbf16>, vector<64x128xbf16>, vector<16x128xf32> -> vector<16x128xf32>
    %23 = arith.addf %17, %22 : vector<16x128xf32>
    %c0_25 = arith.constant 0 : index
    %c2 = arith.constant 2 : index
    %c0_26 = arith.constant 0 : index
    %24 = vector.load %arg8[%c0_25, %c2, %c0_26] : memref<1x18x64xbf16, #tpu.memory_space<vmem>>, vector<1x16x64xbf16>
    %25 = vector.shape_cast %24 : vector<1x16x64xbf16> to vector<16x64xbf16>
    %c2_27 = arith.constant 2 : index
    %c0_28 = arith.constant 0 : index
    %c0_29 = arith.constant 0 : index
    %26 = vector.load %arg2[%c2_27, %c0_28, %c0_29] : memref<3x64x128xbf16, #tpu.memory_space<vmem>>, vector<1x64x128xbf16>
    %27 = vector.shape_cast %26 : vector<1x64x128xbf16> to vector<64x128xbf16>
    %cst_30 = arith.constant dense<0.000000e+00> : vector<16x128xf32>
    %28 = tpu.matmul %25, %27, %cst_30 {dimension_numbers = #tpu.dot_dimension_numbers<[1], [0], [0], [1], [0, 0, 1, 1], [], []>} : vector<16x64xbf16>, vector<64x128xbf16>, vector<16x128xf32> -> vector<16x128xf32>
    %29 = arith.addf %23, %28 : vector<16x128xf32>
    %c0_31 = arith.constant 0 : index
    %c0_32 = arith.constant 0 : index
    %30 = vector.load %arg3[%c0_31, %c0_32] : memref<1x128xf32, #tpu.memory_space<vmem>>, vector<1x128xf32>
    %31 = vector.broadcast %30 : vector<1x128xf32> to vector<16x128xf32>
    %32 = arith.addf %29, %31 : vector<16x128xf32>
    %cst_33 = arith.constant 0.000000e+00 : f32
    %33 = vector.broadcast %cst_33 : f32 to vector<16x128xf32>
    %34 = arith.maximumf %32, %33 : vector<16x128xf32>
    %cst_34 = arith.constant 0.000000e+00 : bf16
    %35 = vector.broadcast %cst_34 : bf16 to vector<1x128xbf16>
    %c0_35 = arith.constant 0 : index
    %c0_36 = arith.constant 0 : index
    %c0_37 = arith.constant 0 : index
    %36 = vector.load %arg9[%c0_35, %c0_36, %c0_37] : memref<1x18x128xbf16, #tpu.memory_space<vmem>>, vector<1x1x128xbf16>
    %37 = vector.shape_cast %36 : vector<1x1x128xbf16> to vector<1x128xbf16>
    %38 = vector.shape_cast %35 : vector<1x128xbf16> to vector<1x1x128xbf16>
    tpu.vector_store %arg9[%c0_35, %c0_36, %c0_37], %38 {strides = array<i32>} : memref<1x18x128xbf16, #tpu.memory_space<vmem>>, vector<1x1x128xbf16>,
    %cst_38 = arith.constant 0.000000e+00 : bf16
    %39 = vector.broadcast %cst_38 : bf16 to vector<1x128xbf16>
    %c0_39 = arith.constant 0 : index
    %c17_40 = arith.constant 17 : index
    %c0_41 = arith.constant 0 : index
    %40 = vector.load %arg9[%c0_39, %c17_40, %c0_41] : memref<1x18x128xbf16, #tpu.memory_space<vmem>>, vector<1x1x128xbf16>
    %41 = vector.shape_cast %40 : vector<1x1x128xbf16> to vector<1x128xbf16>
    %42 = vector.shape_cast %39 : vector<1x128xbf16> to vector<1x1x128xbf16>
    tpu.vector_store %arg9[%c0_39, %c17_40, %c0_41], %42 {strides = array<i32>} : memref<1x18x128xbf16, #tpu.memory_space<vmem>>, vector<1x1x128xbf16>,
    %43 = vector.shape_cast %34 : vector<16x128xf32> to vector<1x16x128xf32>
    %44 = arith.truncf %43 : vector<1x16x128xf32> to vector<1x16x128xbf16>
    %c0_42 = arith.constant 0 : index
    %c1_43 = arith.constant 1 : index
    %c0_44 = arith.constant 0 : index
    %45 = vector.load %arg9[%c0_42, %c1_43, %c0_44] : memref<1x18x128xbf16, #tpu.memory_space<vmem>>, vector<1x16x128xbf16>
    tpu.vector_store %arg9[%c0_42, %c1_43, %c0_44], %44 {strides = array<i32>} : memref<1x18x128xbf16, #tpu.memory_space<vmem>>, vector<1x16x128xbf16>,
    %cst_45 = arith.constant 0.000000e+00 : f32
    %46 = vector.broadcast %cst_45 : f32 to vector<16x128xf32>
    %c0_46 = arith.constant 0 : index
    %c0_47 = arith.constant 0 : index
    %c0_48 = arith.constant 0 : index
    %47 = vector.load %arg9[%c0_46, %c0_47, %c0_48] : memref<1x18x128xbf16, #tpu.memory_space<vmem>>, vector<1x16x128xbf16>
    %48 = vector.shape_cast %47 : vector<1x16x128xbf16> to vector<16x128xbf16>
    %c0_49 = arith.constant 0 : index
    %c0_50 = arith.constant 0 : index
    %c0_51 = arith.constant 0 : index
    %49 = vector.load %arg4[%c0_49, %c0_50, %c0_51] : memref<3x128x128xbf16, #tpu.memory_space<vmem>>, vector<1x128x128xbf16>
    %50 = vector.shape_cast %49 : vector<1x128x128xbf16> to vector<128x128xbf16>
    %cst_52 = arith.constant dense<0.000000e+00> : vector<16x128xf32>
    %51 = tpu.matmul %48, %50, %cst_52 {dimension_numbers = #tpu.dot_dimension_numbers<[1], [0], [0], [1], [0, 0, 1, 1], [], []>} : vector<16x128xbf16>, vector<128x128xbf16>, vector<16x128xf32> -> vector<16x128xf32>
    %52 = arith.addf %46, %51 : vector<16x128xf32>
    %c0_53 = arith.constant 0 : index
    %c1_54 = arith.constant 1 : index
    %c0_55 = arith.constant 0 : index
    %53 = vector.load %arg9[%c0_53, %c1_54, %c0_55] : memref<1x18x128xbf16, #tpu.memory_space<vmem>>, vector<1x16x128xbf16>
    %54 = vector.shape_cast %53 : vector<1x16x128xbf16> to vector<16x128xbf16>
    %c1_56 = arith.constant 1 : index
    %c0_57 = arith.constant 0 : index
    %c0_58 = arith.constant 0 : index
    %55 = vector.load %arg4[%c1_56, %c0_57, %c0_58] : memref<3x128x128xbf16, #tpu.memory_space<vmem>>, vector<1x128x128xbf16>
    %56 = vector.shape_cast %55 : vector<1x128x128xbf16> to vector<128x128xbf16>
    %cst_59 = arith.constant dense<0.000000e+00> : vector<16x128xf32>
    %57 = tpu.matmul %54, %56, %cst_59 {dimension_numbers = #tpu.dot_dimension_numbers<[1], [0], [0], [1], [0, 0, 1, 1], [], []>} : vector<16x128xbf16>, vector<128x128xbf16>, vector<16x128xf32> -> vector<16x128xf32>
    %58 = arith.addf %52, %57 : vector<16x128xf32>
    %c0_60 = arith.constant 0 : index
    %c2_61 = arith.constant 2 : index
    %c0_62 = arith.constant 0 : index
    %59 = vector.load %arg9[%c0_60, %c2_61, %c0_62] : memref<1x18x128xbf16, #tpu.memory_space<vmem>>, vector<1x16x128xbf16>
    %60 = vector.shape_cast %59 : vector<1x16x128xbf16> to vector<16x128xbf16>
    %c2_63 = arith.constant 2 : index
    %c0_64 = arith.constant 0 : index
    %c0_65 = arith.constant 0 : index
    %61 = vector.load %arg4[%c2_63, %c0_64, %c0_65] : memref<3x128x128xbf16, #tpu.memory_space<vmem>>, vector<1x128x128xbf16>
    %62 = vector.shape_cast %61 : vector<1x128x128xbf16> to vector<128x128xbf16>
    %cst_66 = arith.constant dense<0.000000e+00> : vector<16x128xf32>
    %63 = tpu.matmul %60, %62, %cst_66 {dimension_numbers = #tpu.dot_dimension_numbers<[1], [0], [0], [1], [0, 0, 1, 1], [], []>} : vector<16x128xbf16>, vector<128x128xbf16>, vector<16x128xf32> -> vector<16x128xf32>
    %64 = arith.addf %58, %63 : vector<16x128xf32>
    %c0_67 = arith.constant 0 : index
    %c0_68 = arith.constant 0 : index
    %65 = vector.load %arg5[%c0_67, %c0_68] : memref<1x128xf32, #tpu.memory_space<vmem>>, vector<1x128xf32>
    %66 = vector.broadcast %65 : vector<1x128xf32> to vector<16x128xf32>
    %67 = arith.addf %64, %66 : vector<16x128xf32>
    %cst_69 = arith.constant 0.000000e+00 : f32
    %68 = vector.broadcast %cst_69 : f32 to vector<16x128xf32>
    %69 = arith.maximumf %67, %68 : vector<16x128xf32>
    %70 = vector.shape_cast %69 : vector<16x128xf32> to vector<1x16x128xf32>
    %c0_70 = arith.constant 0 : index
    %c0_71 = arith.constant 0 : index
    %c0_72 = arith.constant 0 : index
    %71 = vector.load %arg7[%c0_70, %c0_71, %c0_72] : memref<1x16x128xf32, #tpu.memory_space<vmem>>, vector<1x16x128xf32>
    tpu.vector_store %arg7[%c0_70, %c0_71, %c0_72], %70 {strides = array<i32>} : memref<1x16x128xf32, #tpu.memory_space<vmem>>, vector<1x16x128xf32>,
    %72 = vector.shape_cast %69 : vector<16x128xf32> to vector<1x8x2x128xf32>
    %cst_73 = arith.constant dense<0xFF800000> : vector<1x8x128xf32>
    %73 = vector.multi_reduction <maximumf>, %72, %cst_73 [2] : vector<1x8x2x128xf32> to vector<1x8x128xf32>
    %74 = vector.shape_cast %73 : vector<1x8x128xf32> to vector<8x8x16xf32>
    %75 = vector.extract_strided_slice %74 {offsets = [0, 0, 0], sizes = [8, 8, 8], strides = [1, 1, 1]} : vector<8x8x16xf32> to vector<8x8x8xf32>
    %76 = vector.extract_strided_slice %74 {offsets = [0, 0, 8], sizes = [8, 8, 8], strides = [1, 1, 1]} : vector<8x8x16xf32> to vector<8x8x8xf32>
    %77 = arith.maximumf %75, %76 : vector<8x8x8xf32>
    %78 = vector.shape_cast %77 : vector<8x8x8xf32> to vector<1x8x64xf32>
    %c0_74 = arith.constant 0 : index
    %c0_75 = arith.constant 0 : index
    %c0_76 = arith.constant 0 : index
    %79 = vector.load %arg6[%c0_74, %c0_75, %c0_76] : memref<1x8x64xf32, #tpu.memory_space<vmem>>, vector<1x8x64xf32>
    tpu.vector_store %arg6[%c0_74, %c0_75, %c0_76], %78 {strides = array<i32>} : memref<1x8x64xf32, #tpu.memory_space<vmem>>, vector<1x8x64xf32>,
    return
  }
  func.func @transform_0(%arg0: i32) -> (i32, i32, i32) {
    %c0_i32 = arith.constant 0 : i32
    %c0_i32_0 = arith.constant 0 : i32
    %c0_i32_1 = arith.constant 0 : i32
    return %arg0, %c0_i32, %c0_i32_0 : i32, i32, i32
  }
  func.func @transform_1(%arg0: i32) -> (i32, i32, i32) {
    %c0_i32 = arith.constant 0 : i32
    %c0_i32_0 = arith.constant 0 : i32
    %c0_i32_1 = arith.constant 0 : i32
    %c0_i32_2 = arith.constant 0 : i32
    return %c0_i32, %c0_i32_0, %c0_i32_1 : i32, i32, i32
  }
  func.func @transform_2(%arg0: i32) -> (i32, i32) {
    %c0_i32 = arith.constant 0 : i32
    %c0_i32_0 = arith.constant 0 : i32
    %c0_i32_1 = arith.constant 0 : i32
    return %c0_i32, %c0_i32_0 : i32, i32
  }
  func.func @transform_3(%arg0: i32) -> (i32, i32, i32) {
    %c0_i32 = arith.constant 0 : i32
    %c0_i32_0 = arith.constant 0 : i32
    %c0_i32_1 = arith.constant 0 : i32
    %c0_i32_2 = arith.constant 0 : i32
    return %c0_i32, %c0_i32_0, %c0_i32_1 : i32, i32, i32
  }
  func.func @transform_4(%arg0: i32) -> (i32, i32) {
    %c0_i32 = arith.constant 0 : i32
    %c0_i32_0 = arith.constant 0 : i32
    %c0_i32_1 = arith.constant 0 : i32
    return %c0_i32, %c0_i32_0 : i32, i32
  }
  func.func @transform_5(%arg0: i32) -> (i32, i32, i32) {
    %c0_i32 = arith.constant 0 : i32
    %c0_i32_0 = arith.constant 0 : i32
    %c0_i32_1 = arith.constant 0 : i32
    return %arg0, %c0_i32, %c0_i32_0 : i32, i32, i32
  }
  func.func @transform_6(%arg0: i32) -> (i32, i32, i32) {
    %c0_i32 = arith.constant 0 : i32
    %c0_i32_0 = arith.constant 0 : i32
    %c0_i32_1 = arith.constant 0 : i32
    return %arg0, %c0_i32, %c0_i32_0 : i32, i32, i32
  }
}

</mosaic_0001>

<llo_original>
// kernel: tile.13
$region0: #{tile.13}
  #allocation0 [shape = 's32[1]{0}', space=sflag, size = 0x4, scoped, tag = 'scoped memory for tile.13']
  %s0 = inlined_call_operand.vmem [shape: f32[8], index: 0, kind: input, shape index: {}]
  %s1 = inlined_call_operand.vmem [shape: f32[16,8], index: 1, kind: output, shape index: {}]
  // Predicated region
  $region2: #{tile.13} parent=0 // pred_check
    _
  $region3: #{tile.13} parent=0 // pred_check_branch
    %3 = sbr.rel (0) target = $region5
  $region4: #{tile.13} parent=0 // pred_region
    _
  $region5: #{tile.13} parent=0 // pred_fallthru
    _
  %v4 = vld [vmem:[%s0] ss:$0 sm:$0xff]
  %5 = vst [vmem:[%s1] sm:$0xff] %v4
  %s6 = scalar_lea.vmem %s1, 8
  %7 = vst [vmem:[%s6] sm:$0xff] %v4

// kernel: tile.14
$region0: #{tile.14}
  %s0 = inlined_call_operand.vmem [shape: f32[16,8], index: 0, kind: input, shape index: {}]
  %s1 = inlined_call_operand.vmem [shape: f32[1,128], index: 1, kind: output, shape index: {}]
  $region1: #{tile.14} parent=0
    #allocation0 [shape = 'u8[4096]{0}', space=vmem, size = 0x1000, scoped, tag = 'scoped mem for output reshape']
    %v2 = vld [vmem:[%s0] sm:$0x1]
    %vm3 = vcmask 64512
    %4 = vst.msk [vmem:[#allocation0] sm:$0x1] %vm3, %v2
    %s5 = scalar_lea.vmem %s0, 15
    %v6 = vld [vmem:[%s5] sm:$0x1]
    %7 = vrot.lane.b32.xlu0 %v6, 120
    %v8 = vpop.permute.xlu0 %7
    %vm9 = vcmask 1048512
    %10 = vst.msk [vmem:[#allocation0] sm:$0x1] %vm9, %v8
    %s11 = scalar_lea.vmem %s0, 14
    %v12 = vld [vmem:[%s11] sm:$0x1]
    %13 = vrot.lane.b32.xlu0 %v12, 112
    %v14 = vpop.permute.xlu0 %13
    %vm15 = vcmask 982912
    %16 = vst.msk [vmem:[#allocation0] sm:$0x1] %vm15, %v14
    %s17 = scalar_lea.vmem %s0, 13
    %v18 = vld [vmem:[%s17] sm:$0x1]
    %19 = vrot.lane.b32.xlu0 %v18, 104
    %v20 = vpop.permute.xlu0 %19
    %vm21 = vcmask 917312
    %22 = vst.msk [vmem:[#allocation0] sm:$0x1] %vm21, %v20
    %s23 = scalar_lea.vmem %s0, 12
    %v24 = vld [vmem:[%s23] sm:$0x1]
    %25 = vrot.lane.b32.xlu0 %v24, 96
    %v26 = vpop.permute.xlu0 %25
    %vm27 = vcmask 851712
    %28 = vst.msk [vmem:[#allocation0] sm:$0x1] %vm27, %v26
    %s29 = scalar_lea.vmem %s0, 11
    %v30 = vld [vmem:[%s29] sm:$0x1]
    %31 = vrot.lane.b32.xlu0 %v30, 88
    %v32 = vpop.permute.xlu0 %31
    %vm33 = vcmask 786112
    %34 = vst.msk [vmem:[#allocation0] sm:$0x1] %vm33, %v32
    %s35 = scalar_lea.vmem %s0, 10
    %v36 = vld [vmem:[%s35] sm:$0x1]
    %37 = vrot.lane.b32.xlu0 %v36, 80
    %v38 = vpop.permute.xlu0 %37
    %vm39 = vcmask 720512
    %40 = vst.msk [vmem:[#allocation0] sm:$0x1] %vm39, %v38
    %s41 = scalar_lea.vmem %s0, 9
    %v42 = vld [vmem:[%s41] sm:$0x1]
    %43 = vrot.lane.b32.xlu0 %v42, 72
    %v44 = vpop.permute.xlu0 %43
    %vm45 = vcmask 654912
    %46 = vst.msk [vmem:[#allocation0] sm:$0x1] %vm45, %v44
    %s47 = scalar_lea.vmem %s0, 8
    %v48 = vld [vmem:[%s47] sm:$0x1]
    %49 = vrot.lane.b32.xlu0 %v48, 64
    %v50 = vpop.permute.xlu0 %49
    %vm51 = vcmask 589312
    %52 = vst.msk [vmem:[#allocation0] sm:$0x1] %vm51, %v50
    %s53 = scalar_lea.vmem %s0, 7
    %v54 = vld [vmem:[%s53] sm:$0x1]
    %55 = vrot.lane.b32.xlu0 %v54, 56
    %v56 = vpop.permute.xlu0 %55
    %vm57 = vcmask 523712
    %58 = vst.msk [vmem:[#allocation0] sm:$0x1] %vm57, %v56
    %s59 = scalar_lea.vmem %s0, 6
    %v60 = vld [vmem:[%s59] sm:$0x1]
    %61 = vrot.lane.b32.xlu0 %v60, 48
    %v62 = vpop.permute.xlu0 %61
    %vm63 = vcmask 458112
    %64 = vst.msk [vmem:[#allocation0] sm:$0x1] %vm63, %v62
    %s65 = scalar_lea.vmem %s0, 5
    %v66 = vld [vmem:[%s65] sm:$0x1]
    %67 = vrot.lane.b32.xlu0 %v66, 40
    %v68 = vpop.permute.xlu0 %67
    %vm69 = vcmask 392512
    %70 = vst.msk [vmem:[#allocation0] sm:$0x1] %vm69, %v68
    %s71 = scalar_lea.vmem %s0, 4
    %v72 = vld [vmem:[%s71] sm:$0x1]
    %73 = vrot.lane.b32.xlu0 %v72, 32
    %v74 = vpop.permute.xlu0 %73
    %vm75 = vcmask 326912
    %76 = vst.msk [vmem:[#allocation0] sm:$0x1] %vm75, %v74
    %s77 = scalar_lea.vmem %s0, 3
    %v78 = vld [vmem:[%s77] sm:$0x1]
    %79 = vrot.lane.b32.xlu0 %v78, 24
    %v80 = vpop.permute.xlu0 %79
    %vm81 = vcmask 261312
    %82 = vst.msk [vmem:[#allocation0] sm:$0x1] %vm81, %v80
    %s83 = scalar_lea.vmem %s0, 2
    %v84 = vld [vmem:[%s83] sm:$0x1]
    %85 = vrot.lane.b32.xlu0 %v84, 16
    %v86 = vpop.permute.xlu0 %85
    %vm87 = vcmask 195712
    %88 = vst.msk [vmem:[#allocation0] sm:$0x1] %vm87, %v86
    %s89 = scalar_lea.vmem %s0, 1
    %v90 = vld [vmem:[%s89] sm:$0x1]
    %91 = vrot.lane.b32.xlu0 %v90, 8
    %v92 = vpop.permute.xlu0 %91
    %vm93 = vcmask 130112
    %94 = vst.msk [vmem:[#allocation0] sm:$0x1] %vm93, %v92
    %s96 = ssub.s32 2, 1
    %v97 = vld [vmem:[#allocation0] sm:%s96]
    %s99 = ssub.s32 2, 1
    %100 = vst [vmem:[%s1] sm:%s99] %v97

// kernel: unet_enc_block_forward.1
$region0: #{unet_enc_block_forward.1}
  #allocation0 [shape = 'u32[]', space=smem, size = 0x4, offset = 0x4, fixed_abs, tag = 'smem constant byte address 0x4 - core index']
  #allocation1 [shape = 'u32[72,128]{1,0:T(1,128)}', space=vmem, size = 0x9000, scoped, tag = 'internal scratch']
  #allocation2 [shape = 'bf16[1,18,64]{2,1,0:T(8,128)(2,1)}', space=vmem, size = 0x1800, scoped, tag = 'scratch operand']
  #allocation3 [shape = 'bf16[1,18,128]{2,1,0:T(8,128)(2,1)}', space=vmem, size = 0x1800, scoped, tag = 'scratch operand']
  %s0 = inlined_call_operand.vmem [shape: f32[2,16,64], index: 0, kind: input, shape index: {}]
  %s1 = inlined_call_operand.vmem [shape: bf16[3,64,128], index: 1, kind: input, shape index: {}]
  %s2 = inlined_call_operand.vmem [shape: f32[1,128], index: 2, kind: input, shape index: {}]
  %s3 = inlined_call_operand.vmem [shape: bf16[3,128,128], index: 3, kind: input, shape index: {}]
  %s4 = inlined_call_operand.vmem [shape: f32[1,128], index: 4, kind: input, shape index: {}]
  %s5 = inlined_call_operand.vmem [shape: f32[2,8,64], index: 5, kind: output, shape index: {0}]
  %s6 = inlined_call_operand.vmem [shape: f32[2,16,128], index: 6, kind: output, shape index: {1}]
  %7 = xla_tuple %s5, %s6
  %s8 = sld [smem:[#allocation0]]
  $region61: #{unet_enc_block_forward.1} parent=0
    _
  %s10 = ssub.s32 1, %s8
  %s11 = scalar_select 0, %s10, %s8
  loop: start=0, step=1, limit=4
  $region2: #{unet_enc_block_forward.1} parent=0 // loop_pre_header
    _
  $region3: #{unet_enc_block_forward.1} parent=0 // loop_header
    %s13 = sphi 0, %s17
    %p14 = scmp.ge.s32.totalorder %s13, 4
    %s23 = sphi 0, %s25
    %s26 = sphi 0, %s23
    %s27 = sphi 0, %s26
    %s43 = sphi 0, %s27
    %s47 = sphi 0, %s47
    %s49 = sphi 0, %s47
    %s50 = sphi 0, %s49
    %s64 = sphi 0, %s50
    %s68 = sphi 0, %s68
    %s70 = sphi 0, %s68
    %s71 = sphi 0, %s70
    %s85 = sphi 0, %s71
    %s89 = sphi 0, %s89
    %s91 = sphi 0, %s89
    %s92 = sphi 0, %s91
    %s106 = sphi 0, %s92
    %s110 = sphi 0, %s110
    %s112 = sphi 0, %s110
    %s113 = sphi 0, %s112
    %s127 = sphi 0, %s113
    %s133 = sphi 0, %s135
    %s136 = sphi 0, %s133
    %s137 = sphi 0, %s136
    %s153 = sphi 0, %s137
    %s159 = sphi 0, %s161
    %s162 = sphi 0, %s159
    %s163 = sphi 0, %s162
    %s179 = sphi 0, %s163
  $region4: #{unet_enc_block_forward.1} parent=0 // loop_header_branch
    %16 = sbr.rel (%p14) target = $region8
  $region5: #{unet_enc_block_forward.1} parent=0 // loop_body
    %s18 = ssub.s32 %s13, 1
    %s19 = ssub.s32 %s13, 2
    %s20 = sadd.s32 %s13, 1
    %s21 = ssub.s32 %s13, %s20
    %p22 = scmp.eq.s32.totalorder %s21, 0
    %s24 = sadd.s32 %s23, 1
    %s25 = scalar_select %p22, %s23, %s24
    %p28 = pneg %p22
    %p29 = scmp.eq.s32.totalorder %s13, 1
    %p30 = por %p28, %p29
    %p31 = scmp.ne.s32.totalorder %s23, %s26
    %p32 = scmp.eq.s32.totalorder %s13, 0
    %p33 = por %p31, %p32
    %p34 = scmp.ne.s32.totalorder %s23, %s26
    %p35 = scmp.eq.s32.totalorder %s18, 1
    %p36 = por %p34, %p35
    %p37 = scmp.ne.s32.totalorder %s26, %s27
    %p38 = scmp.eq.s32.totalorder %s18, 0
    %p39 = por %p37, %p38
    %p40 = scmp.ne.s32.totalorder %s26, %s27
    %p41 = scmp.eq.s32.totalorder %s19, 1
    %p42 = por %p40, %p41
    %p44 = scmp.ne.s32.totalorder %s27, %s43
    %p45 = scmp.eq.s32.totalorder %s19, 0
    %p46 = por %p44, %p45
    %s48 = sadd.s32 %s47, 1
    %p51 = scmp.eq.s32.totalorder %s13, 1
    %p52 = scmp.ne.s32.totalorder %s47, %s49
    %p53 = scmp.eq.s32.totalorder %s13, 0
    %p54 = por %p52, %p53
    %p55 = scmp.ne.s32.totalorder %s47, %s49
    %p56 = scmp.eq.s32.totalorder %s18, 1
    %p57 = por %p55, %p56
    %p58 = scmp.ne.s32.totalorder %s49, %s50
    %p59 = scmp.eq.s32.totalorder %s18, 0
    %p60 = por %p58, %p59
    %p61 = scmp.ne.s32.totalorder %s49, %s50
    %p62 = scmp.eq.s32.totalorder %s19, 1
    %p63 = por %p61, %p62
    %p65 = scmp.ne.s32.totalorder %s50, %s64
    %p66 = scmp.eq.s32.totalorder %s19, 0
    %p67 = por %p65, %p66
    %s69 = sadd.s32 %s68, 1
    %p72 = scmp.eq.s32.totalorder %s13, 1
    %p73 = scmp.ne.s32.totalorder %s68, %s70
    %p74 = scmp.eq.s32.totalorder %s13, 0
    %p75 = por %p73, %p74
    %p76 = scmp.ne.s32.totalorder %s68, %s70
    %p77 = scmp.eq.s32.totalorder %s18, 1
    %p78 = por %p76, %p77
    %p79 = scmp.ne.s32.totalorder %s70, %s71
    %p80 = scmp.eq.s32.totalorder %s18, 0
    %p81 = por %p79, %p80
    %p82 = scmp.ne.s32.totalorder %s70, %s71
    %p83 = scmp.eq.s32.totalorder %s19, 1
    %p84 = por %p82, %p83
    %p86 = scmp.ne.s32.totalorder %s71, %s85
    %p87 = scmp.eq.s32.totalorder %s19, 0
    %p88 = por %p86, %p87
    %s90 = sadd.s32 %s89, 1
    %p93 = scmp.eq.s32.totalorder %s13, 1
    %p94 = scmp.ne.s32.totalorder %s89, %s91
    %p95 = scmp.eq.s32.totalorder %s13, 0
    %p96 = por %p94, %p95
    %p97 = scmp.ne.s32.totalorder %s89, %s91
    %p98 = scmp.eq.s32.totalorder %s18, 1
    %p99 = por %p97, %p98
    %p100 = scmp.ne.s32.totalorder %s91, %s92
    %p101 = scmp.eq.s32.totalorder %s18, 0
    %p102 = por %p100, %p101
    %p103 = scmp.ne.s32.totalorder %s91, %s92
    %p104 = scmp.eq.s32.totalorder %s19, 1
    %p105 = por %p103, %p104
    %p107 = scmp.ne.s32.totalorder %s92, %s106
    %p108 = scmp.eq.s32.totalorder %s19, 0
    %p109 = por %p107, %p108
    %s111 = sadd.s32 %s110, 1
    %p114 = scmp.eq.s32.totalorder %s13, 1
    %p115 = scmp.ne.s32.totalorder %s110, %s112
    %p116 = scmp.eq.s32.totalorder %s13, 0
    %p117 = por %p115, %p116
    %p118 = scmp.ne.s32.totalorder %s110, %s112
    %p119 = scmp.eq.s32.totalorder %s18, 1
    %p120 = por %p118, %p119
    %p121 = scmp.ne.s32.totalorder %s112, %s113
    %p122 = scmp.eq.s32.totalorder %s18, 0
    %p123 = por %p121, %p122
    %p124 = scmp.ne.s32.totalorder %s112, %s113
    %p125 = scmp.eq.s32.totalorder %s19, 1
    %p126 = por %p124, %p125
    %p128 = scmp.ne.s32.totalorder %s113, %s127
    %p129 = scmp.eq.s32.totalorder %s19, 0
    %p130 = por %p128, %p129
    %s131 = ssub.s32 %s13, %s20
    %p132 = scmp.eq.s32.totalorder %s131, 0
    %s134 = sadd.s32 %s133, 1
    %s135 = scalar_select %p132, %s133, %s134
    %p138 = pneg %p132
    %p139 = scmp.eq.s32.totalorder %s13, 1
    %p140 = por %p138, %p139
    %p141 = scmp.ne.s32.totalorder %s133, %s136
    %p142 = scmp.eq.s32.totalorder %s13, 0
    %p143 = por %p141, %p142
    %p144 = scmp.ne.s32.totalorder %s133, %s136
    %p145 = scmp.eq.s32.totalorder %s18, 1
    %p146 = por %p144, %p145
    %p147 = scmp.ne.s32.totalorder %s136, %s137
    %p148 = scmp.eq.s32.totalorder %s18, 0
    %p149 = por %p147, %p148
    %p150 = scmp.ne.s32.totalorder %s136, %s137
    %p151 = scmp.eq.s32.totalorder %s19, 1
    %p152 = por %p150, %p151
    %p154 = scmp.ne.s32.totalorder %s137, %s153
    %p155 = scmp.eq.s32.totalorder %s19, 0
    %p156 = por %p154, %p155
    %s157 = ssub.s32 %s13, %s20
    %p158 = scmp.eq.s32.totalorder %s157, 0
    %s160 = sadd.s32 %s159, 1
    %s161 = scalar_select %p158, %s159, %s160
    %p164 = pneg %p158
    %p165 = scmp.eq.s32.totalorder %s13, 1
    %p166 = por %p164, %p165
    %p167 = scmp.ne.s32.totalorder %s159, %s162
    %p168 = scmp.eq.s32.totalorder %s13, 0
    %p169 = por %p167, %p168
    %p170 = scmp.ne.s32.totalorder %s159, %s162
    %p171 = scmp.eq.s32.totalorder %s18, 1
    %p172 = por %p170, %p171
    %p173 = scmp.ne.s32.totalorder %s162, %s163
    %p174 = scmp.eq.s32.totalorder %s18, 0
    %p175 = por %p173, %p174
    %p176 = scmp.ne.s32.totalorder %s162, %s163
    %p177 = scmp.eq.s32.totalorder %s19, 1
    %p178 = por %p176, %p177
    %p180 = scmp.ne.s32.totalorder %s163, %s179
    %p181 = scmp.eq.s32.totalorder %s19, 0
    %p182 = por %p180, %p181
    %p183 = scmp.le.s32.totalorder 1, %s13
    %p184 = scmp.lt.s32.totalorder %s13, 3
    %p185 = pnand %p183, %p184
    %p186 = pneg %p185
    // Predicated region
    $region9: #{unet_enc_block_forward.1} parent=5 // pred_check
      _
    $region10: #{unet_enc_block_forward.1} parent=5 // pred_check_branch
      %188 = sbr.rel (%p185) target = $region12
    $region11: #{unet_enc_block_forward.1} parent=5 // pred_region
      %s189 = ssub.s32 %s13, 1
      // Predicated region
      $region13: #{unet_enc_block_forward.1} parent=11 // pred_check
        %p190 = pneg %p60
      $region14: #{unet_enc_block_forward.1} parent=11 // pred_check_branch
        %192 = sbr.rel (%p190) target = $region16
      $region15: #{unet_enc_block_forward.1} parent=11 // pred_region
        _
      $region16: #{unet_enc_block_forward.1} parent=11 // pred_fallthru
        _
      // Predicated region
      $region17: #{unet_enc_block_forward.1} parent=11 // pred_check
        %p193 = pneg %p81
      $region18: #{unet_enc_block_forward.1} parent=11 // pred_check_branch
        %195 = sbr.rel (%p193) target = $region20
      $region19: #{unet_enc_block_forward.1} parent=11 // pred_region
        _
      $region20: #{unet_enc_block_forward.1} parent=11 // pred_fallthru
        _
      // Predicated region
      $region21: #{unet_enc_block_forward.1} parent=11 // pred_check
        %p196 = pneg %p102
      $region22: #{unet_enc_block_forward.1} parent=11 // pred_check_branch
        %198 = sbr.rel (%p196) target = $region24
      $region23: #{unet_enc_block_forward.1} parent=11 // pred_region
        _
      $region24: #{unet_enc_block_forward.1} parent=11 // pred_fallthru
        _
      // Predicated region
      $region25: #{unet_enc_block_forward.1} parent=11 // pred_check
        %p199 = pneg %p123
      $region26: #{unet_enc_block_forward.1} parent=11 // pred_check_branch
        %201 = sbr.rel (%p199) target = $region28
      $region27: #{unet_enc_block_forward.1} parent=11 // pred_region
        _
      $region28: #{unet_enc_block_forward.1} parent=11 // pred_fallthru
        _
    $region12: #{unet_enc_block_forward.1} parent=5 // pred_fallthru
      _
    %p202 = scmp.lt.s32.totalorder %s13, 2
    // Predicated region
    $region29: #{unet_enc_block_forward.1} parent=5 // pred_check
      %p203 = pneg %p202
    $region30: #{unet_enc_block_forward.1} parent=5 // pred_check_branch
      %205 = sbr.rel (%p203) target = $region32
    $region31: #{unet_enc_block_forward.1} parent=5 // pred_region
      // Predicated region
      $region33: #{unet_enc_block_forward.1} parent=31 // pred_check
        %p206 = pneg %p33
      $region34: #{unet_enc_block_forward.1} parent=31 // pred_check_branch
        %208 = sbr.rel (%p206) target = $region36
      $region35: #{unet_enc_block_forward.1} parent=31 // pred_region
        %p209 = scmp.lt.s32.totalorder %s13, 1
        %s210 = scalar_select %p209, %s13, 1
        %s211 = smul.addr %s210, 2
        %s212 = smul.addr %s211, 8
        %s213 = scalar_lea.vmem %s0, %s212
      $region36: #{unet_enc_block_forward.1} parent=31 // pred_fallthru
        _
    $region32: #{unet_enc_block_forward.1} parent=5 // pred_fallthru
      _
    %p214 = scmp.le.s32.totalorder 1, %s13
    %p215 = scmp.lt.s32.totalorder %s13, 3
    %p216 = pnand %p214, %p215
    %p217 = pneg %p216
    // Predicated region
    $region37: #{unet_enc_block_forward.1} parent=5 // pred_check
      _
    $region38: #{unet_enc_block_forward.1} parent=5 // pred_check_branch
      %219 = sbr.rel (%p216) target = $region40
    $region39: #{unet_enc_block_forward.1} parent=5 // pred_region
      %s220 = ssub.s32 %s13, 1
      %p221 = scmp.lt.s32.totalorder %s18, 1
      %s222 = scalar_select %p221, %s18, 1
      %s223 = smul.addr %s222, 2
      %s224 = smul.addr %s223, 8
      %s225 = scalar_lea.vmem %s0, %s224
      %p226 = pneg %p39
      %p227 = pneg %p36
      %p228 = pneg %p60
      %p229 = pneg %p57
      %p230 = pneg %p81
      %p231 = pneg %p78
      %p232 = pneg %p102
      %p233 = pneg %p99
      %p234 = pneg %p123
      %p235 = pneg %p120
      %p236 = pneg %p149
      %p237 = pneg %p146
      %p238 = scmp.lt.s32.totalorder %s18, 1
      %s239 = scalar_select %p238, %s18, 1
      %s240 = smul.addr %s239, 8
      %s241 = scalar_lea.vmem %s5, %s240
      %p242 = pneg %p175
      %p243 = pneg %p172
      %p244 = scmp.lt.s32.totalorder %s18, 1
      %s245 = scalar_select %p244, %s18, 1
      %s246 = smul.addr %s245, 2
      %s247 = smul.addr %s246, 8
      %s248 = scalar_lea.vmem %s6, %s247
      %p249 = scmp.lt.s32.totalorder %s18, 1
      %s250 = scalar_select %p249, %s18, 1
      %s251 = smul.addr %s250, 2
      %s252 = smul.addr %s251, 8
      %s253 = scalar_lea.vmem %s0, %s252
      %p254 = scmp.lt.s32.totalorder %s18, 1
      %s255 = scalar_select %p254, %s18, 1
      %s256 = smul.addr %s255, 8
      %s257 = scalar_lea.vmem %s5, %s256
      %p258 = scmp.lt.s32.totalorder %s18, 1
      %s259 = scalar_select %p258, %s18, 1
      %s260 = smul.addr %s259, 2
      %s261 = smul.addr %s260, 8
      %s262 = scalar_lea.vmem %s6, %s261
      %vm264 = vcmask 516096
      %vm265 = vsmask.f32 256
      %vm266 = vmand %vm264, %vm265
      %v267 = vld [vmem:[#allocation2] sm:$0x1]
      %v268 = vsel %vm266, 0, %v267
      %269 = vst [vmem:[#allocation2] sm:$0x1] %v268
      %vm270 = vsmask.f32 7938
      %vm271 = vmand %vm264, %vm270
      %v272 = vld [vmem:[#allocation2 + $0x8] sm:$0x1]
      %v273 = vsel %vm271, 0, %v272
      %274 = vst [vmem:[#allocation2 + $0x8] sm:$0x1] %v273
      %v275 = vld [vmem:[%s253] sm:$0xff]
      %v276 = vld [vmem:[%s253 + $0x8] sm:$0xff]
      %v277 = vpack.c.bf16 %v275, %v275
      %v278 = vpack.c.bf16 %v276, %v276
      %vm279 = vsmask.f32 4368
      %vm280 = vmor %vm265, %vm279
      %v282 = vshrl.u32 %v277, 16
      %v284 = vrot.slane %v282, 7
      %v285 = vshll.u32 %v277, 16
      %v287 = vor.u32 %v284, %v285
      %v288 = vrot.slane %v284, 4
      %v290 = vshrl.u32 %v278, 16
      %v292 = vrot.slane %v290, 7
      %v293 = vshll.u32 %v278, 16
      %v295 = vor.u32 %v292, %v293
      %v296 = vsel %vm280, %v288, %v295
      %v297 = vrot.slane %v292, 4
      %vm301 = vcmask 519168
      %vm302 = vmand %vm301, %vm270
      %v303 = vld [vmem:[#allocation2] sm:$0xf]
      %v304 = vsel %vm302, %v287, %v303
      %305 = vst [vmem:[#allocation2] sm:$0xf] %v304
      %vm306 = vcmask 519168
      %307 = vst.msk [vmem:[#allocation2 + $0x4] sm:$0xf] %vm306, %v296
      %v308 = vld [vmem:[#allocation2 + $0x8] sm:$0x1]
      %v309 = vsel %vm266, %v297, %v308
      %310 = vst [vmem:[#allocation2 + $0x8] sm:$0x1] %v309
      %v311 = vld [vmem:[#allocation2] sm:$0xf]
      %v312 = vld [vmem:[#allocation2 + $0x4] sm:$0xf]
      %v313 = vld [vmem:[%s1] sm:$0xf]
      %v314 = vld [vmem:[%s1 + $0x4] sm:$0xf]
      %v315 = vld [vmem:[%s1 + $0x8] sm:$0xf]
      %v316 = vld [vmem:[%s1 + $0xc] sm:$0xf]
      %v317 = vld [vmem:[%s1 + $0x10] sm:$0xf]
      %v318 = vld [vmem:[%s1 + $0x14] sm:$0xf]
      %v319 = vld [vmem:[%s1 + $0x18] sm:$0xf]
      %v320 = vld [vmem:[%s1 + $0x1c] sm:$0xf]
      %v321 = vld [vmem:[#allocation2 + $0x8] sm:$0x1]
      %s322 = scalar_lea.vmem %s1, 32
      %v323 = vld [vmem:[%s322] sm:$0xf]
      %v324 = vld [vmem:[%s322 + $0x4] sm:$0xf]
      %v325 = vld [vmem:[%s322 + $0x8] sm:$0xf]
      %v326 = vld [vmem:[%s322 + $0xc] sm:$0xf]
      %v327 = vld [vmem:[%s322 + $0x10] sm:$0xf]
      %v328 = vld [vmem:[%s322 + $0x14] sm:$0xf]
      %v329 = vld [vmem:[%s322 + $0x18] sm:$0xf]
      %v330 = vld [vmem:[%s322 + $0x1c] sm:$0xf]
      %v334 = vunpack.c.l.b16 %v311
      %v335 = vunpack.c.l.b16 %v312
      %v336 = vunpack.c.l.b16 %v321
      %v337 = vpack.c.b16 %v335, %v334
      %v338 = vpack.c.b16 %v336, %v336
      %vm339 = vsmask.f32 7424
      %v341 = vshrl.u32 %v337, 16
      %v343 = vshll.u32 %v337, 16
      %v345 = vrot.slane %v343, 1
      %v346 = vor.u32 %v341, %v345
      %v348 = vshll.u32 %v338, 16
      %v350 = vrot.slane %v348, 1
      %v351 = vsel %vm339, %v346, %v350
      %v360 = vunpack.c.l.b16 %v323
      %v361 = vunpack.c.l.b16 %v324
      %v362 = vunpack.c.l.b16 %v325
      %v363 = vunpack.c.l.b16 %v326
      %v364 = vunpack.c.l.b16 %v327
      %v365 = vunpack.c.l.b16 %v328
      %v366 = vunpack.c.l.b16 %v329
      %v367 = vunpack.c.l.b16 %v330
      %v368 = vpack.c.b16 %v361, %v360
      %v369 = vpack.c.b16 %v363, %v362
      %v370 = vpack.c.b16 %v365, %v364
      %v371 = vpack.c.b16 %v367, %v366
      %vm376 = vcmask 523264
      %v378 = vsel %vm376, %v351, 0
      %380 = vmatpush.bf16.msra.mxu0 0
      %381 = vmatpush.bf16.msra.mxu0 0
      %382 = vmatpush.bf16.msra.mxu0 0
      %383 = vmatpush.bf16.msra.mxu0 0
      %384 = vmatpush.bf16.msra.mxu0 %v371
      %385 = vmatpush.bf16.msra.mxu0 %v370
      %386 = vmatpush.bf16.msra.mxu0 %v369
      %387 = vmatpush.bf16.msra.mxu0 %v368
      %388 = vmatmul.bf16.gmra.mxu0 %v378
      %v389 = vpop.f32.mrf.mxu0
      %v390 = vadd.f32 0.0, %v389
      %v391 = vpop.f32.mrf.mxu0
      %v392 = vadd.f32 0.0, %v391
      %393 = vdwg.mxu0
      %v402 = vunpack.c.l.b16 %v313
      %v403 = vunpack.c.l.b16 %v314
      %v404 = vunpack.c.l.b16 %v315
      %v405 = vunpack.c.l.b16 %v316
      %v406 = vunpack.c.l.b16 %v317
      %v407 = vunpack.c.l.b16 %v318
      %v408 = vunpack.c.l.b16 %v319
      %v409 = vunpack.c.l.b16 %v320
      %v410 = vpack.c.b16 %v403, %v402
      %v411 = vpack.c.b16 %v405, %v404
      %v412 = vpack.c.b16 %v407, %v406
      %v413 = vpack.c.b16 %v409, %v408
      %v418 = vsel %vm376, %v337, 0
      %420 = vmatpush.bf16.msra.mxu0 0
      %421 = vmatpush.bf16.msra.mxu0 0
      %422 = vmatpush.bf16.msra.mxu0 0
      %423 = vmatpush.bf16.msra.mxu0 0
      %424 = vmatpush.bf16.msra.mxu0 %v413
      %425 = vmatpush.bf16.msra.mxu0 %v412
      %426 = vmatpush.bf16.msra.mxu0 %v411
      %427 = vmatpush.bf16.msra.mxu0 %v410
      %428 = vmatmul.bf16.gmra.mxu0 %v418
      %v429 = vpop.f32.mrf.mxu0
      %v430 = vadd.f32 %v390, %v429
      %v431 = vpop.f32.mrf.mxu0
      %v432 = vadd.f32 %v392, %v431
      %433 = vdwg.mxu0
      %v434 = vld [vmem:[#allocation2] sm:$0xe]
      %s435 = scalar_lea.vmem %s1, 64
      %v436 = vld [vmem:[%s435] sm:$0xf]
      %v437 = vld [vmem:[%s435 + $0x4] sm:$0xf]
      %v438 = vld [vmem:[%s435 + $0x8] sm:$0xf]
      %v439 = vld [vmem:[%s435 + $0xc] sm:$0xf]
      %v440 = vld [vmem:[%s435 + $0x10] sm:$0xf]
      %v441 = vld [vmem:[%s435 + $0x14] sm:$0xf]
      %v442 = vld [vmem:[%s435 + $0x18] sm:$0xf]
      %v443 = vld [vmem:[%s435 + $0x1c] sm:$0xf]
      %v445 = vunpack.c.l.b16 %v434
      %v446 = vpack.c.b16 %v335, %v445
      %vm447 = vcmask 1046528
      %v448 = vrot.slane %v446, 1
      %v449 = vrot.slane %v338, 1
      %v450 = vsel %vm447, %v448, %v449
      %v459 = vunpack.c.l.b16 %v436
      %v460 = vunpack.c.l.b16 %v437
      %v461 = vunpack.c.l.b16 %v438
      %v462 = vunpack.c.l.b16 %v439
      %v463 = vunpack.c.l.b16 %v440
      %v464 = vunpack.c.l.b16 %v441
      %v465 = vunpack.c.l.b16 %v442
      %v466 = vunpack.c.l.b16 %v443
      %v467 = vpack.c.b16 %v460, %v459
      %v468 = vpack.c.b16 %v462, %v461
      %v469 = vpack.c.b16 %v464, %v463
      %v470 = vpack.c.b16 %v466, %v465
      %v476 = vsel %vm376, %v450, 0
      %478 = vmatpush.bf16.msra.mxu0 0
      %479 = vmatpush.bf16.msra.mxu0 0
      %480 = vmatpush.bf16.msra.mxu0 0
      %481 = vmatpush.bf16.msra.mxu0 0
      %482 = vmatpush.bf16.msra.mxu0 %v470
      %483 = vmatpush.bf16.msra.mxu0 %v469
      %484 = vmatpush.bf16.msra.mxu0 %v468
      %485 = vmatpush.bf16.msra.mxu0 %v467
      %486 = vmatmul.bf16.gmra.mxu0 %v476
      %v487 = vpop.f32.mrf.mxu0
      %v488 = vadd.f32 0.0, %v487
      %v489 = vpop.f32.mrf.mxu0
      %v490 = vadd.f32 0.0, %v489
      %491 = vdwg.mxu0
      %v492 = vadd.f32 %v430, %v488
      %v493 = vadd.f32 %v432, %v490
      %v494 = vld [vmem:[%s2] sm:$0x1]
      %v496 = vperm.slane %v494, 0
      %v498 = vadd.f32 %v492, %v496
      %v499 = vadd.f32 %v493, %v496
      %v500 = vmax.f32 %v498, 0.0
      %v501 = vmax.f32 %v499, 0.0
      %vm502 = vcmask 1040384
      %vm503 = vmand %vm502, %vm265
      %v504 = vld [vmem:[#allocation3] sm:$0x1]
      %v505 = vsel %vm503, 0, %v504
      %506 = vst [vmem:[#allocation3] sm:$0x1] %v505
      %vm507 = vmand %vm502, %vm270
      %v508 = vld [vmem:[#allocation3 + $0x8] sm:$0x1]
      %v509 = vsel %vm507, 0, %v508
      %510 = vst [vmem:[#allocation3 + $0x8] sm:$0x1] %v509
      %v511 = vpack.c.bf16 %v500, %v500
      %v512 = vpack.c.bf16 %v501, %v501
      %v514 = vshrl.u32 %v511, 16
      %v516 = vrot.slane %v514, 7
      %v517 = vshll.u32 %v511, 16
      %v519 = vor.u32 %v516, %v517
      %v520 = vrot.slane %v516, 4
      %v522 = vshrl.u32 %v512, 16
      %v524 = vrot.slane %v522, 7
      %v525 = vshll.u32 %v512, 16
      %v527 = vor.u32 %v524, %v525
      %v528 = vsel %vm280, %v520, %v527
      %v529 = vrot.slane %v524, 4
      %vm533 = vcmask 1043456
      %vm534 = vmand %vm533, %vm270
      %v535 = vld [vmem:[#allocation3] sm:$0xf]
      %v536 = vsel %vm534, %v519, %v535
      %537 = vst [vmem:[#allocation3] sm:$0xf] %v536
      %538 = vst [vmem:[#allocation3 + $0x4] sm:$0xf] %v528
      %v539 = vld [vmem:[#allocation3 + $0x8] sm:$0x1]
      %v540 = vsel %vm503, %v529, %v539
      %541 = vst [vmem:[#allocation3 + $0x8] sm:$0x1] %v540
      %v542 = vld [vmem:[#allocation3] sm:$0xf]
      %v543 = vld [vmem:[#allocation3 + $0x4] sm:$0xf]
      %v544 = vld [vmem:[%s3] sm:$0xf]
      %v545 = vld [vmem:[%s3 + $0x4] sm:$0xf]
      %v546 = vld [vmem:[%s3 + $0x8] sm:$0xf]
      %v547 = vld [vmem:[%s3 + $0xc] sm:$0xf]
      %v548 = vld [vmem:[%s3 + $0x10] sm:$0xf]
      %v549 = vld [vmem:[%s3 + $0x14] sm:$0xf]
      %v550 = vld [vmem:[%s3 + $0x18] sm:$0xf]
      %v551 = vld [vmem:[%s3 + $0x1c] sm:$0xf]
      %v552 = vld [vmem:[%s3 + $0x20] sm:$0xf]
      %v553 = vld [vmem:[%s3 + $0x24] sm:$0xf]
      %v554 = vld [vmem:[%s3 + $0x28] sm:$0xf]
      %v555 = vld [vmem:[%s3 + $0x2c] sm:$0xf]
      %v556 = vld [vmem:[%s3 + $0x30] sm:$0xf]
      %v557 = vld [vmem:[%s3 + $0x34] sm:$0xf]
      %v558 = vld [vmem:[%s3 + $0x38] sm:$0xf]
      %v559 = vld [vmem:[%s3 + $0x3c] sm:$0xf]
      %v560 = vld [vmem:[#allocation3 + $0x8] sm:$0x1]
      %s561 = scalar_lea.vmem %s3, 64
      %v562 = vld [vmem:[%s561] sm:$0xf]
      %v563 = vld [vmem:[%s561 + $0x4] sm:$0xf]
      %v564 = vld [vmem:[%s561 + $0x8] sm:$0xf]
      %v565 = vld [vmem:[%s561 + $0xc] sm:$0xf]
      %v566 = vld [vmem:[%s561 + $0x10] sm:$0xf]
      %v567 = vld [vmem:[%s561 + $0x14] sm:$0xf]
      %v568 = vld [vmem:[%s561 + $0x18] sm:$0xf]
      %v569 = vld [vmem:[%s561 + $0x1c] sm:$0xf]
      %v570 = vld [vmem:[%s561 + $0x20] sm:$0xf]
      %v571 = vld [vmem:[%s561 + $0x24] sm:$0xf]
      %v572 = vld [vmem:[%s561 + $0x28] sm:$0xf]
      %v573 = vld [vmem:[%s561 + $0x2c] sm:$0xf]
      %v574 = vld [vmem:[%s561 + $0x30] sm:$0xf]
      %v575 = vld [vmem:[%s561 + $0x34] sm:$0xf]
      %v576 = vld [vmem:[%s561 + $0x38] sm:$0xf]
      %v577 = vld [vmem:[%s561 + $0x3c] sm:$0xf]
      %v581 = vunpack.c.l.b16 %v542
      %v582 = vunpack.c.l.b16 %v543
      %v583 = vunpack.c.l.b16 %v560
      %v584 = vpack.c.b16 %v582, %v581
      %v585 = vpack.c.b16 %v583, %v583
      %v587 = vshrl.u32 %v584, 16
      %v589 = vshll.u32 %v584, 16
      %v591 = vrot.slane %v589, 1
      %v592 = vor.u32 %v587, %v591
      %v594 = vshll.u32 %v585, 16
      %v596 = vrot.slane %v594, 1
      %v597 = vsel %vm339, %v592, %v596
      %v615 = vunpack.c.l.b16 %v562
      %v616 = vunpack.c.l.b16 %v563
      %v617 = vunpack.c.l.b16 %v564
      %v618 = vunpack.c.l.b16 %v565
      %v619 = vunpack.c.l.b16 %v566
      %v620 = vunpack.c.l.b16 %v567
      %v621 = vunpack.c.l.b16 %v568
      %v622 = vunpack.c.l.b16 %v569
      %v623 = vunpack.c.l.b16 %v570
      %v624 = vunpack.c.l.b16 %v571
      %v625 = vunpack.c.l.b16 %v572
      %v626 = vunpack.c.l.b16 %v573
      %v627 = vunpack.c.l.b16 %v574
      %v628 = vunpack.c.l.b16 %v575
      %v629 = vunpack.c.l.b16 %v576
      %v630 = vunpack.c.l.b16 %v577
      %v631 = vpack.c.b16 %v616, %v615
      %v632 = vpack.c.b16 %v618, %v617
      %v633 = vpack.c.b16 %v620, %v619
      %v634 = vpack.c.b16 %v622, %v621
      %v635 = vpack.c.b16 %v624, %v623
      %v636 = vpack.c.b16 %v626, %v625
      %v637 = vpack.c.b16 %v628, %v627
      %v638 = vpack.c.b16 %v630, %v629
      %647 = vmatpush.bf16.msra.mxu0 %v638
      %648 = vmatpush.bf16.msra.mxu0 %v637
      %649 = vmatpush.bf16.msra.mxu0 %v636
      %650 = vmatpush.bf16.msra.mxu0 %v635
      %651 = vmatpush.bf16.msra.mxu0 %v634
      %652 = vmatpush.bf16.msra.mxu0 %v633
      %653 = vmatpush.bf16.msra.mxu0 %v632
      %654 = vmatpush.bf16.msra.mxu0 %v631
      %655 = vmatmul.bf16.gmra.mxu0 %v597
      %v656 = vpop.f32.mrf.mxu0
      %v657 = vadd.f32 0.0, %v656
      %v658 = vpop.f32.mrf.mxu0
      %v659 = vadd.f32 0.0, %v658
      %660 = vdwg.mxu0
      %v678 = vunpack.c.l.b16 %v544
      %v679 = vunpack.c.l.b16 %v545
      %v680 = vunpack.c.l.b16 %v546
      %v681 = vunpack.c.l.b16 %v547
      %v682 = vunpack.c.l.b16 %v548
      %v683 = vunpack.c.l.b16 %v549
      %v684 = vunpack.c.l.b16 %v550
      %v685 = vunpack.c.l.b16 %v551
      %v686 = vunpack.c.l.b16 %v552
      %v687 = vunpack.c.l.b16 %v553
      %v688 = vunpack.c.l.b16 %v554
      %v689 = vunpack.c.l.b16 %v555
      %v690 = vunpack.c.l.b16 %v556
      %v691 = vunpack.c.l.b16 %v557
      %v692 = vunpack.c.l.b16 %v558
      %v693 = vunpack.c.l.b16 %v559
      %v694 = vpack.c.b16 %v679, %v678
      %v695 = vpack.c.b16 %v681, %v680
      %v696 = vpack.c.b16 %v683, %v682
      %v697 = vpack.c.b16 %v685, %v684
      %v698 = vpack.c.b16 %v687, %v686
      %v699 = vpack.c.b16 %v689, %v688
      %v700 = vpack.c.b16 %v691, %v690
      %v701 = vpack.c.b16 %v693, %v692
      %710 = vmatpush.bf16.msra.mxu0 %v701
      %711 = vmatpush.bf16.msra.mxu0 %v700
      %712 = vmatpush.bf16.msra.mxu0 %v699
      %713 = vmatpush.bf16.msra.mxu0 %v698
      %714 = vmatpush.bf16.msra.mxu0 %v697
      %715 = vmatpush.bf16.msra.mxu0 %v696
      %716 = vmatpush.bf16.msra.mxu0 %v695
      %717 = vmatpush.bf16.msra.mxu0 %v694
      %718 = vmatmul.bf16.gmra.mxu0 %v584
      %v719 = vpop.f32.mrf.mxu0
      %v720 = vadd.f32 %v657, %v719
      %v721 = vpop.f32.mrf.mxu0
      %v722 = vadd.f32 %v659, %v721
      %723 = vdwg.mxu0
      %v724 = vld [vmem:[#allocation3] sm:$0xe]
      %s725 = scalar_lea.vmem %s3, 128
      %v726 = vld [vmem:[%s725] sm:$0xf]
      %v727 = vld [vmem:[%s725 + $0x4] sm:$0xf]
      %v728 = vld [vmem:[%s725 + $0x8] sm:$0xf]
      %v729 = vld [vmem:[%s725 + $0xc] sm:$0xf]
      %v730 = vld [vmem:[%s725 + $0x10] sm:$0xf]
      %v731 = vld [vmem:[%s725 + $0x14] sm:$0xf]
      %v732 = vld [vmem:[%s725 + $0x18] sm:$0xf]
      %v733 = vld [vmem:[%s725 + $0x1c] sm:$0xf]
      %v734 = vld [vmem:[%s725 + $0x20] sm:$0xf]
      %v735 = vld [vmem:[%s725 + $0x24] sm:$0xf]
      %v736 = vld [vmem:[%s725 + $0x28] sm:$0xf]
      %v737 = vld [vmem:[%s725 + $0x2c] sm:$0xf]
      %v738 = vld [vmem:[%s725 + $0x30] sm:$0xf]
      %v739 = vld [vmem:[%s725 + $0x34] sm:$0xf]
      %v740 = vld [vmem:[%s725 + $0x38] sm:$0xf]
      %v741 = vld [vmem:[%s725 + $0x3c] sm:$0xf]
      %v743 = vunpack.c.l.b16 %v724
      %v744 = vpack.c.b16 %v582, %v743
      %v745 = vrot.slane %v744, 1
      %v746 = vrot.slane %v585, 1
      %v747 = vsel %vm447, %v745, %v746
      %v765 = vunpack.c.l.b16 %v726
      %v766 = vunpack.c.l.b16 %v727
      %v767 = vunpack.c.l.b16 %v728
      %v768 = vunpack.c.l.b16 %v729
      %v769 = vunpack.c.l.b16 %v730
      %v770 = vunpack.c.l.b16 %v731
      %v771 = vunpack.c.l.b16 %v732
      %v772 = vunpack.c.l.b16 %v733
      %v773 = vunpack.c.l.b16 %v734
      %v774 = vunpack.c.l.b16 %v735
      %v775 = vunpack.c.l.b16 %v736
      %v776 = vunpack.c.l.b16 %v737
      %v777 = vunpack.c.l.b16 %v738
      %v778 = vunpack.c.l.b16 %v739
      %v779 = vunpack.c.l.b16 %v740
      %v780 = vunpack.c.l.b16 %v741
      %v781 = vpack.c.b16 %v766, %v765
      %v782 = vpack.c.b16 %v768, %v767
      %v783 = vpack.c.b16 %v770, %v769
      %v784 = vpack.c.b16 %v772, %v771
      %v785 = vpack.c.b16 %v774, %v773
      %v786 = vpack.c.b16 %v776, %v775
      %v787 = vpack.c.b16 %v778, %v777
      %v788 = vpack.c.b16 %v780, %v779
      %797 = vmatpush.bf16.msra.mxu0 %v788
      %798 = vmatpush.bf16.msra.mxu0 %v787
      %799 = vmatpush.bf16.msra.mxu0 %v786
      %800 = vmatpush.bf16.msra.mxu0 %v785
      %801 = vmatpush.bf16.msra.mxu0 %v784
      %802 = vmatpush.bf16.msra.mxu0 %v783
      %803 = vmatpush.bf16.msra.mxu0 %v782
      %804 = vmatpush.bf16.msra.mxu0 %v781
      %805 = vmatmul.bf16.gmra.mxu0 %v747
      %v806 = vpop.f32.mrf.mxu0
      %v807 = vadd.f32 0.0, %v806
      %v808 = vpop.f32.mrf.mxu0
      %v809 = vadd.f32 0.0, %v808
      %810 = vdwg.mxu0
      %v811 = vadd.f32 %v720, %v807
      %v812 = vadd.f32 %v722, %v809
      %v813 = vld [vmem:[%s4] sm:$0x1]
      %v815 = vperm.slane %v813, 0
      %v817 = vadd.f32 %v811, %v815
      %v818 = vadd.f32 %v812, %v815
      %v819 = vmax.f32 %v817, 0.0
      %v820 = vmax.f32 %v818, 0.0
      %821 = vst [vmem:[%s262] sm:$0xff] %v819
      %822 = vst [vmem:[%s262 + $0x8] sm:$0xff] %v820
      %v825 = vrot.slane %v819, 2
      %v826 = vrot.slane %v819, 4
      %v827 = vrot.slane %v819, 6
      %v828 = vrot.slane %v820, 2
      %v829 = vrot.slane %v820, 4
      %v830 = vrot.slane %v820, 6
      %vm837 = vcmask 1041408
      %v838 = vsel %vm837, %v819, -inf
      %v839 = vrot.slane %v838, 4
      %v840 = vmax.f32 %v838, %v839
      %v841 = vrot.slane %v840, 2
      %v842 = vmax.f32 %v840, %v841
      %v843 = vrot.slane %v842, 1
      %v844 = vmax.f32 %v842, %v843
      %v845 = vsel %vm837, %v825, -inf
      %v846 = vrot.slane %v845, 4
      %v847 = vmax.f32 %v845, %v846
      %v848 = vrot.slane %v847, 2
      %v849 = vmax.f32 %v847, %v848
      %v850 = vrot.slane %v849, 1
      %v851 = vmax.f32 %v849, %v850
      %v852 = vsel %vm837, %v826, -inf
      %v853 = vrot.slane %v852, 4
      %v854 = vmax.f32 %v852, %v853
      %v855 = vrot.slane %v854, 2
      %v856 = vmax.f32 %v854, %v855
      %v857 = vrot.slane %v856, 1
      %v858 = vmax.f32 %v856, %v857
      %v859 = vsel %vm837, %v827, -inf
      %v860 = vrot.slane %v859, 4
      %v861 = vmax.f32 %v859, %v860
      %v862 = vrot.slane %v861, 2
      %v863 = vmax.f32 %v861, %v862
      %v864 = vrot.slane %v863, 1
      %v865 = vmax.f32 %v863, %v864
      %v866 = vsel %vm837, %v820, -inf
      %v867 = vrot.slane %v866, 4
      %v868 = vmax.f32 %v866, %v867
      %v869 = vrot.slane %v868, 2
      %v870 = vmax.f32 %v868, %v869
      %v871 = vrot.slane %v870, 1
      %v872 = vmax.f32 %v870, %v871
      %v873 = vsel %vm837, %v828, -inf
      %v874 = vrot.slane %v873, 4
      %v875 = vmax.f32 %v873, %v874
      %v876 = vrot.slane %v875, 2
      %v877 = vmax.f32 %v875, %v876
      %v878 = vrot.slane %v877, 1
      %v879 = vmax.f32 %v877, %v878
      %v880 = vsel %vm837, %v829, -inf
      %v881 = vrot.slane %v880, 4
      %v882 = vmax.f32 %v880, %v881
      %v883 = vrot.slane %v882, 2
      %v884 = vmax.f32 %v882, %v883
      %v885 = vrot.slane %v884, 1
      %v886 = vmax.f32 %v884, %v885
      %v887 = vsel %vm837, %v830, -inf
      %v888 = vrot.slane %v887, 4
      %v889 = vmax.f32 %v887, %v888
      %v890 = vrot.slane %v889, 2
      %v891 = vmax.f32 %v889, %v890
      %v892 = vrot.slane %v891, 1
      %v893 = vmax.f32 %v891, %v892
      %902 = vrot.lane.b32.xlu0 %v844, 112
      %v903 = vpop.permute.xlu0 %902
      %904 = vrot.lane.b32.xlu0 %v851, 112
      %v905 = vpop.permute.xlu0 %904
      %906 = vrot.lane.b32.xlu0 %v858, 112
      %v907 = vpop.permute.xlu0 %906
      %908 = vrot.lane.b32.xlu0 %v865, 112
      %v909 = vpop.permute.xlu0 %908
      %910 = vrot.lane.b32.xlu0 %v872, 112
      %v911 = vpop.permute.xlu0 %910
      %912 = vrot.lane.b32.xlu0 %v879, 112
      %v913 = vpop.permute.xlu0 %912
      %914 = vrot.lane.b32.xlu0 %v886, 112
      %v915 = vpop.permute.xlu0 %914
      %916 = vrot.lane.b32.xlu0 %v893, 112
      %v917 = vpop.permute.xlu0 %916
      %918 = vrot.lane.b32.xlu0 %v844, 96
      %v919 = vpop.permute.xlu0 %918
      %920 = vrot.lane.b32.xlu0 %v851, 96
      %v921 = vpop.permute.xlu0 %920
      %922 = vrot.lane.b32.xlu0 %v858, 96
      %v923 = vpop.permute.xlu0 %922
      %924 = vrot.lane.b32.xlu0 %v865, 96
      %v925 = vpop.permute.xlu0 %924
      %926 = vrot.lane.b32.xlu0 %v872, 96
      %v927 = vpop.permute.xlu0 %926
      %928 = vrot.lane.b32.xlu0 %v879, 96
      %v929 = vpop.permute.xlu0 %928
      %930 = vrot.lane.b32.xlu0 %v886, 96
      %v931 = vpop.permute.xlu0 %930
      %932 = vrot.lane.b32.xlu0 %v893, 96
      %v933 = vpop.permute.xlu0 %932
      %934 = vrot.lane.b32.xlu0 %v844, 80
      %v935 = vpop.permute.xlu0 %934
      %936 = vrot.lane.b32.xlu0 %v851, 80
      %v937 = vpop.permute.xlu0 %936
      %938 = vrot.lane.b32.xlu0 %v858, 80
      %v939 = vpop.permute.xlu0 %938
      %940 = vrot.lane.b32.xlu0 %v865, 80
      %v941 = vpop.permute.xlu0 %940
      %942 = vrot.lane.b32.xlu0 %v872, 80
      %v943 = vpop.permute.xlu0 %942
      %944 = vrot.lane.b32.xlu0 %v879, 80
      %v945 = vpop.permute.xlu0 %944
      %946 = vrot.lane.b32.xlu0 %v886, 80
      %v947 = vpop.permute.xlu0 %946
      %948 = vrot.lane.b32.xlu0 %v893, 80
      %v949 = vpop.permute.xlu0 %948
      %950 = vrot.lane.b32.xlu0 %v844, 64
      %v951 = vpop.permute.xlu0 %950
      %952 = vrot.lane.b32.xlu0 %v851, 64
      %v953 = vpop.permute.xlu0 %952
      %954 = vrot.lane.b32.xlu0 %v858, 64
      %v955 = vpop.permute.xlu0 %954
      %956 = vrot.lane.b32.xlu0 %v865, 64
      %v957 = vpop.permute.xlu0 %956
      %958 = vrot.lane.b32.xlu0 %v872, 64
      %v959 = vpop.permute.xlu0 %958
      %960 = vrot.lane.b32.xlu0 %v879, 64
      %v961 = vpop.permute.xlu0 %960
      %962 = vrot.lane.b32.xlu0 %v886, 64
      %v963 = vpop.permute.xlu0 %962
      %964 = vrot.lane.b32.xlu0 %v893, 64
      %v965 = vpop.permute.xlu0 %964
      %966 = vrot.lane.b32.xlu0 %v844, 48
      %v967 = vpop.permute.xlu0 %966
      %968 = vrot.lane.b32.xlu0 %v851, 48
      %v969 = vpop.permute.xlu0 %968
      %970 = vrot.lane.b32.xlu0 %v858, 48
      %v971 = vpop.permute.xlu0 %970
      %972 = vrot.lane.b32.xlu0 %v865, 48
      %v973 = vpop.permute.xlu0 %972
      %974 = vrot.lane.b32.xlu0 %v872, 48
      %v975 = vpop.permute.xlu0 %974
      %976 = vrot.lane.b32.xlu0 %v879, 48
      %v977 = vpop.permute.xlu0 %976
      %978 = vrot.lane.b32.xlu0 %v886, 48
      %v979 = vpop.permute.xlu0 %978
      %980 = vrot.lane.b32.xlu0 %v893, 48
      %v981 = vpop.permute.xlu0 %980
      %982 = vrot.lane.b32.xlu0 %v844, 32
      %v983 = vpop.permute.xlu0 %982
      %984 = vrot.lane.b32.xlu0 %v851, 32
      %v985 = vpop.permute.xlu0 %984
      %986 = vrot.lane.b32.xlu0 %v858, 32
      %v987 = vpop.permute.xlu0 %986
      %988 = vrot.lane.b32.xlu0 %v865, 32
      %v989 = vpop.permute.xlu0 %988
      %990 = vrot.lane.b32.xlu0 %v872, 32
      %v991 = vpop.permute.xlu0 %990
      %992 = vrot.lane.b32.xlu0 %v879, 32
      %v993 = vpop.permute.xlu0 %992
      %994 = vrot.lane.b32.xlu0 %v886, 32
      %v995 = vpop.permute.xlu0 %994
      %996 = vrot.lane.b32.xlu0 %v893, 32
      %v997 = vpop.permute.xlu0 %996
      %998 = vrot.lane.b32.xlu0 %v844, 16
      %v999 = vpop.permute.xlu0 %998
      %1000 = vrot.lane.b32.xlu0 %v851, 16
      %v1001 = vpop.permute.xlu0 %1000
      %1002 = vrot.lane.b32.xlu0 %v858, 16
      %v1003 = vpop.permute.xlu0 %1002
      %1004 = vrot.lane.b32.xlu0 %v865, 16
      %v1005 = vpop.permute.xlu0 %1004
      %1006 = vrot.lane.b32.xlu0 %v872, 16
      %v1007 = vpop.permute.xlu0 %1006
      %1008 = vrot.lane.b32.xlu0 %v879, 16
      %v1009 = vpop.permute.xlu0 %1008
      %1010 = vrot.lane.b32.xlu0 %v886, 16
      %v1011 = vpop.permute.xlu0 %1010
      %1012 = vrot.lane.b32.xlu0 %v893, 16
      %v1013 = vpop.permute.xlu0 %1012
      %v1014 = vrot.slane %v851, 7
      %vm1015 = vcmask 1041409
      %v1016 = vsel %vm1015, %v1014, %v844
      %v1017 = vrot.slane %v858, 6
      %vm1018 = vcmask 1042434
      %v1019 = vsel %vm1018, %v1017, %v1016
      %v1020 = vrot.slane %v865, 5
      %vm1021 = vcmask 1043459
      %v1022 = vsel %vm1021, %v1020, %v1019
      %v1023 = vrot.slane %v872, 4
      %vm1024 = vcmask 1044484
      %v1025 = vsel %vm1024, %v1023, %v1022
      %v1026 = vrot.slane %v879, 3
      %vm1027 = vcmask 1045509
      %v1028 = vsel %vm1027, %v1026, %v1025
      %v1029 = vrot.slane %v886, 2
      %vm1030 = vcmask 1046534
      %v1031 = vsel %vm1030, %v1029, %v1028
      %v1032 = vrot.slane %v893, 1
      %vm1033 = vcmask 1047559
      %v1034 = vsel %vm1033, %v1032, %v1031
      %v1035 = vrot.slane %v905, 7
      %v1036 = vsel %vm1015, %v1035, %v903
      %v1037 = vrot.slane %v907, 6
      %v1038 = vsel %vm1018, %v1037, %v1036
      %v1039 = vrot.slane %v909, 5
      %v1040 = vsel %vm1021, %v1039, %v1038
      %v1041 = vrot.slane %v911, 4
      %v1042 = vsel %vm1024, %v1041, %v1040
      %v1043 = vrot.slane %v913, 3
      %v1044 = vsel %vm1027, %v1043, %v1042
      %v1045 = vrot.slane %v915, 2
      %v1046 = vsel %vm1030, %v1045, %v1044
      %v1047 = vrot.slane %v917, 1
      %v1048 = vsel %vm1033, %v1047, %v1046
      %v1049 = vrot.slane %v921, 7
      %v1050 = vsel %vm1015, %v1049, %v919
      %v1051 = vrot.slane %v923, 6
      %v1052 = vsel %vm1018, %v1051, %v1050
      %v1053 = vrot.slane %v925, 5
      %v1054 = vsel %vm1021, %v1053, %v1052
      %v1055 = vrot.slane %v927, 4
      %v1056 = vsel %vm1024, %v1055, %v1054
      %v1057 = vrot.slane %v929, 3
      %v1058 = vsel %vm1027, %v1057, %v1056
      %v1059 = vrot.slane %v931, 2
      %v1060 = vsel %vm1030, %v1059, %v1058
      %v1061 = vrot.slane %v933, 1
      %v1062 = vsel %vm1033, %v1061, %v1060
      %v1063 = vrot.slane %v937, 7
      %v1064 = vsel %vm1015, %v1063, %v935
      %v1065 = vrot.slane %v939, 6
      %v1066 = vsel %vm1018, %v1065, %v1064
      %v1067 = vrot.slane %v941, 5
      %v1068 = vsel %vm1021, %v1067, %v1066
      %v1069 = vrot.slane %v943, 4
      %v1070 = vsel %vm1024, %v1069, %v1068
      %v1071 = vrot.slane %v945, 3
      %v1072 = vsel %vm1027, %v1071, %v1070
      %v1073 = vrot.slane %v947, 2
      %v1074 = vsel %vm1030, %v1073, %v1072
      %v1075 = vrot.slane %v949, 1
      %v1076 = vsel %vm1033, %v1075, %v1074
      %v1077 = vrot.slane %v953, 7
      %v1078 = vsel %vm1015, %v1077, %v951
      %v1079 = vrot.slane %v955, 6
      %v1080 = vsel %vm1018, %v1079, %v1078
      %v1081 = vrot.slane %v957, 5
      %v1082 = vsel %vm1021, %v1081, %v1080
      %v1083 = vrot.slane %v959, 4
      %v1084 = vsel %vm1024, %v1083, %v1082
      %v1085 = vrot.slane %v961, 3
      %v1086 = vsel %vm1027, %v1085, %v1084
      %v1087 = vrot.slane %v963, 2
      %v1088 = vsel %vm1030, %v1087, %v1086
      %v1089 = vrot.slane %v965, 1
      %v1090 = vsel %vm1033, %v1089, %v1088
      %v1091 = vrot.slane %v969, 7
      %v1092 = vsel %vm1015, %v1091, %v967
      %v1093 = vrot.slane %v971, 6
      %v1094 = vsel %vm1018, %v1093, %v1092
      %v1095 = vrot.slane %v973, 5
      %v1096 = vsel %vm1021, %v1095, %v1094
      %v1097 = vrot.slane %v975, 4
      %v1098 = vsel %vm1024, %v1097, %v1096
      %v1099 = vrot.slane %v977, 3
      %v1100 = vsel %vm1027, %v1099, %v1098
      %v1101 = vrot.slane %v979, 2
      %v1102 = vsel %vm1030, %v1101, %v1100
      %v1103 = vrot.slane %v981, 1
      %v1104 = vsel %vm1033, %v1103, %v1102
      %v1105 = vrot.slane %v985, 7
      %v1106 = vsel %vm1015, %v1105, %v983
      %v1107 = vrot.slane %v987, 6
      %v1108 = vsel %vm1018, %v1107, %v1106
      %v1109 = vrot.slane %v989, 5
      %v1110 = vsel %vm1021, %v1109, %v1108
      %v1111 = vrot.slane %v991, 4
      %v1112 = vsel %vm1024, %v1111, %v1110
      %v1113 = vrot.slane %v993, 3
      %v1114 = vsel %vm1027, %v1113, %v1112
      %v1115 = vrot.slane %v995, 2
      %v1116 = vsel %vm1030, %v1115, %v1114
      %v1117 = vrot.slane %v997, 1
      %v1118 = vsel %vm1033, %v1117, %v1116
      %v1119 = vrot.slane %v1001, 7
      %v1120 = vsel %vm1015, %v1119, %v999
      %v1121 = vrot.slane %v1003, 6
      %v1122 = vsel %vm1018, %v1121, %v1120
      %v1123 = vrot.slane %v1005, 5
      %v1124 = vsel %vm1021, %v1123, %v1122
      %v1125 = vrot.slane %v1007, 4
      %v1126 = vsel %vm1024, %v1125, %v1124
      %v1127 = vrot.slane %v1009, 3
      %v1128 = vsel %vm1027, %v1127, %v1126
      %v1129 = vrot.slane %v1011, 2
      %v1130 = vsel %vm1030, %v1129, %v1128
      %v1131 = vrot.slane %v1013, 1
      %v1132 = vsel %vm1033, %v1131, %v1130
      %v1141 = vrot.slane %v1062, 4
      %vm1142 = vcmask 1047556
      %v1143 = vsel %vm1142, %v1141, %v1034
      %v1144 = vrot.slane %v1034, 4
      %v1145 = vsel %vm1142, %v1062, %v1144
      %v1147 = vunpack.c.l.s4 1983009808
      %v1148 = vunpack.c.0.s8 %v1147
      %v1149 = vperm.slane %v1143, %v1148
      %v1151 = vunpack.c.l.s4 1983009808
      %v1152 = vunpack.c.0.s8 %v1151
      %v1153 = vperm.slane %v1145, %v1152
      %v1154 = vrot.slane %v1076, 4
      %v1155 = vsel %vm1142, %v1154, %v1048
      %v1156 = vrot.slane %v1048, 4
      %v1157 = vsel %vm1142, %v1076, %v1156
      %v1159 = vunpack.c.l.s4 1983009808
      %v1160 = vunpack.c.0.s8 %v1159
      %v1161 = vperm.slane %v1155, %v1160
      %v1163 = vunpack.c.l.s4 1983009808
      %v1164 = vunpack.c.0.s8 %v1163
      %v1165 = vperm.slane %v1157, %v1164
      %v1166 = vrot.slane %v1118, 4
      %v1167 = vsel %vm1142, %v1166, %v1090
      %v1168 = vrot.slane %v1090, 4
      %v1169 = vsel %vm1142, %v1118, %v1168
      %v1171 = vunpack.c.l.s4 1983009808
      %v1172 = vunpack.c.0.s8 %v1171
      %v1173 = vperm.slane %v1167, %v1172
      %v1175 = vunpack.c.l.s4 1983009808
      %v1176 = vunpack.c.0.s8 %v1175
      %v1177 = vperm.slane %v1169, %v1176
      %v1178 = vrot.slane %v1132, 4
      %v1179 = vsel %vm1142, %v1178, %v1104
      %v1180 = vrot.slane %v1104, 4
      %v1181 = vsel %vm1142, %v1132, %v1180
      %v1183 = vunpack.c.l.s4 1983009808
      %v1184 = vunpack.c.0.s8 %v1183
      %v1185 = vperm.slane %v1179, %v1184
      %v1187 = vunpack.c.l.s4 1983009808
      %v1188 = vunpack.c.0.s8 %v1187
      %v1189 = vperm.slane %v1181, %v1188
      %v1190 = vrot.slane %v1161, 4
      %v1191 = vsel %vm1142, %v1190, %v1149
      %v1192 = vrot.slane %v1149, 4
      %v1193 = vsel %vm1142, %v1161, %v1192
      %v1195 = vunpack.c.l.s4 1934713408
      %v1196 = vunpack.c.0.s8 %v1195
      %v1197 = vperm.slane %v1191, %v1196
      %v1199 = vunpack.c.l.s4 1934713408
      %v1200 = vunpack.c.0.s8 %v1199
      %v1201 = vperm.slane %v1193, %v1200
      %v1202 = vrot.slane %v1165, 4
      %v1203 = vsel %vm1142, %v1202, %v1153
      %v1204 = vrot.slane %v1153, 4
      %v1205 = vsel %vm1142, %v1165, %v1204
      %v1207 = vunpack.c.l.s4 1934713408
      %v1208 = vunpack.c.0.s8 %v1207
      %v1209 = vperm.slane %v1203, %v1208
      %v1211 = vunpack.c.l.s4 1934713408
      %v1212 = vunpack.c.0.s8 %v1211
      %v1213 = vperm.slane %v1205, %v1212
      %v1214 = vrot.slane %v1185, 4
      %v1215 = vsel %vm1142, %v1214, %v1173
      %v1216 = vrot.slane %v1173, 4
      %v1217 = vsel %vm1142, %v1185, %v1216
      %v1219 = vunpack.c.l.s4 1934713408
      %v1220 = vunpack.c.0.s8 %v1219
      %v1221 = vperm.slane %v1215, %v1220
      %v1223 = vunpack.c.l.s4 1934713408
      %v1224 = vunpack.c.0.s8 %v1223
      %v1225 = vperm.slane %v1217, %v1224
      %v1226 = vrot.slane %v1189, 4
      %v1227 = vsel %vm1142, %v1226, %v1177
      %v1228 = vrot.slane %v1177, 4
      %v1229 = vsel %vm1142, %v1189, %v1228
      %v1231 = vunpack.c.l.s4 1934713408
      %v1232 = vunpack.c.0.s8 %v1231
      %v1233 = vperm.slane %v1227, %v1232
      %v1235 = vunpack.c.l.s4 1934713408
      %v1236 = vunpack.c.0.s8 %v1235
      %v1237 = vperm.slane %v1229, %v1236
      %v1238 = vrot.slane %v1221, 4
      %v1239 = vsel %vm1142, %v1238, %v1197
      %v1240 = vrot.slane %v1197, 4
      %v1241 = vsel %vm1142, %v1221, %v1240
      %v1242 = vrot.slane %v1225, 4
      %v1243 = vsel %vm1142, %v1242, %v1201
      %v1244 = vrot.slane %v1201, 4
      %v1245 = vsel %vm1142, %v1225, %v1244
      %v1246 = vrot.slane %v1233, 4
      %v1247 = vsel %vm1142, %v1246, %v1209
      %v1248 = vrot.slane %v1209, 4
      %v1249 = vsel %vm1142, %v1233, %v1248
      %v1250 = vrot.slane %v1237, 4
      %v1251 = vsel %vm1142, %v1250, %v1213
      %v1252 = vrot.slane %v1213, 4
      %v1253 = vsel %vm1142, %v1237, %v1252
      %1262 = vrot.lane.b32.xlu0 %v1239, 120
      %v1263 = vpop.permute.xlu0 %1262
      %1264 = vrot.lane.b32.xlu0 %v1241, 120
      %v1265 = vpop.permute.xlu0 %1264
      %1266 = vrot.lane.b32.xlu0 %v1243, 120
      %v1267 = vpop.permute.xlu0 %1266
      %1268 = vrot.lane.b32.xlu0 %v1245, 120
      %v1269 = vpop.permute.xlu0 %1268
      %1270 = vrot.lane.b32.xlu0 %v1247, 120
      %v1271 = vpop.permute.xlu0 %1270
      %1272 = vrot.lane.b32.xlu0 %v1249, 120
      %v1273 = vpop.permute.xlu0 %1272
      %1274 = vrot.lane.b32.xlu0 %v1251, 120
      %v1275 = vpop.permute.xlu0 %1274
      %1276 = vrot.lane.b32.xlu0 %v1253, 120
      %v1277 = vpop.permute.xlu0 %1276
      %v1286 = vmax.f32 %v1239, %v1263
      %v1287 = vmax.f32 %v1241, %v1265
      %v1288 = vmax.f32 %v1243, %v1267
      %v1289 = vmax.f32 %v1245, %v1269
      %v1290 = vmax.f32 %v1247, %v1271
      %v1291 = vmax.f32 %v1249, %v1273
      %v1292 = vmax.f32 %v1251, %v1275
      %v1293 = vmax.f32 %v1253, %v1277
      %v1294 = vrot.slane %v1288, 4
      %v1295 = vsel %vm1142, %v1294, %v1286
      %v1296 = vrot.slane %v1286, 4
      %v1297 = vsel %vm1142, %v1288, %v1296
      %v1299 = vunpack.c.l.s4 1983009808
      %v1300 = vunpack.c.0.s8 %v1299
      %v1301 = vperm.slane %v1295, %v1300
      %v1303 = vunpack.c.l.s4 1983009808
      %v1304 = vunpack.c.0.s8 %v1303
      %v1305 = vperm.slane %v1297, %v1304
      %v1306 = vrot.slane %v1289, 4
      %v1307 = vsel %vm1142, %v1306, %v1287
      %v1308 = vrot.slane %v1287, 4
      %v1309 = vsel %vm1142, %v1289, %v1308
      %v1311 = vunpack.c.l.s4 1983009808
      %v1312 = vunpack.c.0.s8 %v1311
      %v1313 = vperm.slane %v1307, %v1312
      %v1315 = vunpack.c.l.s4 1983009808
      %v1316 = vunpack.c.0.s8 %v1315
      %v1317 = vperm.slane %v1309, %v1316
      %v1318 = vrot.slane %v1292, 4
      %v1319 = vsel %vm1142, %v1318, %v1290
      %v1320 = vrot.slane %v1290, 4
      %v1321 = vsel %vm1142, %v1292, %v1320
      %v1323 = vunpack.c.l.s4 1983009808
      %v1324 = vunpack.c.0.s8 %v1323
      %v1325 = vperm.slane %v1319, %v1324
      %v1327 = vunpack.c.l.s4 1983009808
      %v1328 = vunpack.c.0.s8 %v1327
      %v1329 = vperm.slane %v1321, %v1328
      %v1330 = vrot.slane %v1293, 4
      %v1331 = vsel %vm1142, %v1330, %v1291
      %v1332 = vrot.slane %v1291, 4
      %v1333 = vsel %vm1142, %v1293, %v1332
      %v1335 = vunpack.c.l.s4 1983009808
      %v1336 = vunpack.c.0.s8 %v1335
      %v1337 = vperm.slane %v1331, %v1336
      %v1339 = vunpack.c.l.s4 1983009808
      %v1340 = vunpack.c.0.s8 %v1339
      %v1341 = vperm.slane %v1333, %v1340
      %v1342 = vrot.slane %v1313, 4
      %v1343 = vsel %vm1142, %v1342, %v1301
      %v1344 = vrot.slane %v1301, 4
      %v1345 = vsel %vm1142, %v1313, %v1344
      %v1347 = vunpack.c.l.s4 1934713408
      %v1348 = vunpack.c.0.s8 %v1347
      %v1349 = vperm.slane %v1343, %v1348
      %v1351 = vunpack.c.l.s4 1934713408
      %v1352 = vunpack.c.0.s8 %v1351
      %v1353 = vperm.slane %v1345, %v1352
      %v1354 = vrot.slane %v1317, 4
      %v1355 = vsel %vm1142, %v1354, %v1305
      %v1356 = vrot.slane %v1305, 4
      %v1357 = vsel %vm1142, %v1317, %v1356
      %v1359 = vunpack.c.l.s4 1934713408
      %v1360 = vunpack.c.0.s8 %v1359
      %v1361 = vperm.slane %v1355, %v1360
      %v1363 = vunpack.c.l.s4 1934713408
      %v1364 = vunpack.c.0.s8 %v1363
      %v1365 = vperm.slane %v1357, %v1364
      %v1366 = vrot.slane %v1337, 4
      %v1367 = vsel %vm1142, %v1366, %v1325
      %v1368 = vrot.slane %v1325, 4
      %v1369 = vsel %vm1142, %v1337, %v1368
      %v1371 = vunpack.c.l.s4 1934713408
      %v1372 = vunpack.c.0.s8 %v1371
      %v1373 = vperm.slane %v1367, %v1372
      %v1375 = vunpack.c.l.s4 1934713408
      %v1376 = vunpack.c.0.s8 %v1375
      %v1377 = vperm.slane %v1369, %v1376
      %v1378 = vrot.slane %v1341, 4
      %v1379 = vsel %vm1142, %v1378, %v1329
      %v1380 = vrot.slane %v1329, 4
      %v1381 = vsel %vm1142, %v1341, %v1380
      %v1383 = vunpack.c.l.s4 1934713408
      %v1384 = vunpack.c.0.s8 %v1383
      %v1385 = vperm.slane %v1379, %v1384
      %v1387 = vunpack.c.l.s4 1934713408
      %v1388 = vunpack.c.0.s8 %v1387
      %v1389 = vperm.slane %v1381, %v1388
      %v1390 = vrot.slane %v1373, 4
      %v1391 = vsel %vm1142, %v1390, %v1349
      %v1392 = vrot.slane %v1349, 4
      %v1393 = vsel %vm1142, %v1373, %v1392
      %v1394 = vrot.slane %v1377, 4
      %v1395 = vsel %vm1142, %v1394, %v1353
      %v1396 = vrot.slane %v1353, 4
      %v1397 = vsel %vm1142, %v1377, %v1396
      %v1398 = vrot.slane %v1385, 4
      %v1399 = vsel %vm1142, %v1398, %v1361
      %v1400 = vrot.slane %v1361, 4
      %v1401 = vsel %vm1142, %v1385, %v1400
      %v1402 = vrot.slane %v1389, 4
      %v1403 = vsel %vm1142, %v1402, %v1365
      %v1404 = vrot.slane %v1365, 4
      %v1405 = vsel %vm1142, %v1389, %v1404
      %1407 = vrot.lane.b32.xlu0 %v1393, 8
      %v1408 = vpop.permute.xlu0 %1407
      %1411 = vrot.lane.b32.xlu0 %v1395, 16
      %v1412 = vpop.permute.xlu0 %1411
      %1415 = vrot.lane.b32.xlu0 %v1397, 24
      %v1416 = vpop.permute.xlu0 %1415
      %1419 = vrot.lane.b32.xlu0 %v1399, 32
      %v1420 = vpop.permute.xlu0 %1419
      %1423 = vrot.lane.b32.xlu0 %v1401, 40
      %v1424 = vpop.permute.xlu0 %1423
      %1427 = vrot.lane.b32.xlu0 %v1403, 48
      %v1428 = vpop.permute.xlu0 %1427
      %1431 = vrot.lane.b32.xlu0 %v1405, 56
      %v1432 = vpop.permute.xlu0 %1431
      %vm1434 = vcmask 64512
      %v1435 = vsel %vm1434, %v1391, %v1408
      %vm1436 = vcmask 130048
      %v1437 = vsel %vm1436, %v1435, %v1412
      %vm1438 = vcmask 195584
      %v1439 = vsel %vm1438, %v1437, %v1416
      %vm1440 = vcmask 261120
      %v1441 = vsel %vm1440, %v1439, %v1420
      %vm1442 = vcmask 326656
      %v1443 = vsel %vm1442, %v1441, %v1424
      %vm1444 = vcmask 392192
      %v1445 = vsel %vm1444, %v1443, %v1428
      %vm1446 = vcmask 457728
      %v1447 = vsel %vm1446, %v1445, %v1432
      %1448 = vst.msk [vmem:[%s257] sm:$0xff] %vm376, %v1447
      %p1449 = scmp.lt.s32.totalorder %s18, 1
      %s1450 = scalar_select %p1449, %s18, 1
      %s1451 = smul.addr %s1450, 8
      %s1452 = scalar_lea.vmem %s5, %s1451
      %p1453 = scmp.lt.s32.totalorder %s18, 1
      %s1454 = scalar_select %p1453, %s18, 1
      %s1455 = smul.addr %s1454, 2
      %s1456 = smul.addr %s1455, 8
      %s1457 = scalar_lea.vmem %s6, %s1456
      // Predicated region
      $region41: #{unet_enc_block_forward.1} parent=39 // pred_check
        %p1458 = pneg %p146
      $region42: #{unet_enc_block_forward.1} parent=39 // pred_check_branch
        %1460 = sbr.rel (%p1458) target = $region44
      $region43: #{unet_enc_block_forward.1} parent=39 // pred_region
        _
      $region44: #{unet_enc_block_forward.1} parent=39 // pred_fallthru
        _
      // Predicated region
      $region45: #{unet_enc_block_forward.1} parent=39 // pred_check
        %p1461 = pneg %p172
      $region46: #{unet_enc_block_forward.1} parent=39 // pred_check_branch
        %1463 = sbr.rel (%p1461) target = $region48
      $region47: #{unet_enc_block_forward.1} parent=39 // pred_region
        _
      $region48: #{unet_enc_block_forward.1} parent=39 // pred_fallthru
        _
    $region40: #{unet_enc_block_forward.1} parent=5 // pred_fallthru
      _
    %p1464 = scmp.le.s32.totalorder 2, %s13
    // Predicated region
    $region49: #{unet_enc_block_forward.1} parent=5 // pred_check
      %p1465 = pneg %p1464
    $region50: #{unet_enc_block_forward.1} parent=5 // pred_check_branch
      %1467 = sbr.rel (%p1465) target = $region52
    $region51: #{unet_enc_block_forward.1} parent=5 // pred_region
      %s1468 = ssub.s32 %s13, 2
      // Predicated region
      $region53: #{unet_enc_block_forward.1} parent=51 // pred_check
        %p1469 = pneg %p152
      $region54: #{unet_enc_block_forward.1} parent=51 // pred_check_branch
        %1471 = sbr.rel (%p1469) target = $region56
      $region55: #{unet_enc_block_forward.1} parent=51 // pred_region
        %p1472 = scmp.lt.s32.totalorder %s19, 1
        %s1473 = scalar_select %p1472, %s19, 1
        %s1474 = smul.addr %s1473, 8
        %s1475 = scalar_lea.vmem %s5, %s1474
      $region56: #{unet_enc_block_forward.1} parent=51 // pred_fallthru
        _
      // Predicated region
      $region57: #{unet_enc_block_forward.1} parent=51 // pred_check
        %p1476 = pneg %p178
      $region58: #{unet_enc_block_forward.1} parent=51 // pred_check_branch
        %1478 = sbr.rel (%p1476) target = $region60
      $region59: #{unet_enc_block_forward.1} parent=51 // pred_region
        %p1479 = scmp.lt.s32.totalorder %s19, 1
        %s1480 = scalar_select %p1479, %s19, 1
        %s1481 = smul.addr %s1480, 2
        %s1482 = smul.addr %s1481, 8
        %s1483 = scalar_lea.vmem %s6, %s1482
      $region60: #{unet_enc_block_forward.1} parent=51 // pred_fallthru
        _
    $region52: #{unet_enc_block_forward.1} parent=5 // pred_fallthru
      _
  $region6: #{unet_enc_block_forward.1} parent=0 // loop_footer
    %s17 = sadd.s32 1, %s13
  $region7: #{unet_enc_block_forward.1} parent=0 // loop_footer_branch
    %12 = sbr.rel target = $region3
  $region8: #{unet_enc_block_forward.1} parent=0 // loop_exit
    _

</llo_original>
